<compile_context>
chip_gen: v5e
topology: v5e:2x2
jax: 0.10.0
libtpu: 0.0.40
codegen_flags: <defaults>
</compile_context>

<pallas_src>
import jax
import jax.numpy as jnp
from jax import lax
from jax.experimental import pallas as pl
from jax.experimental.pallas import tpu as pltpu

EMBED = 32     # embedding_size
HIDDEN = 32    # hidden_size == context_size
NGATES = 4     # fused lane order: 0=forget, 1=input_gate, 2=output_gate, 3=candidate


def lstm_seq_kernel(xs_ref, h0_ref, c0_ref, wx_ref, wh_ref, b_ref,
                    hc_ref, xpre_ref):
    """Run the LSTMCell recurrence over all T timesteps for one batch block.

    xs_ref : (T, BB, EMBED)        input embeddings (time-major, batch block)
    h0_ref : (BB, HIDDEN)          initial hidden
    c0_ref : (BB, HIDDEN)          initial context
    wx_ref : (EMBED, 4*HIDDEN)     fused input-side weights  (gate order f, i, o, g;
                                   candidate columns pre-scaled by 2)
    wh_ref : (HIDDEN, 4*HIDDEN)    fused hidden-side weights (same scaling)
    b_ref  : (1, 4*HIDDEN)         fused biases (same scaling)
    hc_ref : (T, BB, 2*HIDDEN)     lane-dense output, lanes laid out [h | c]
    xpre_ref : (T*BB, 4*HIDDEN)    VMEM scratch for the hoisted x-side preactivations
    """
    T, BB, E = xs_ref.shape
    H = HIDDEN

    # Phase 1 (non-recurrent): one lane-dense (T*BB, E) @ (E, 4H) MXU matmul covering
    # every timestep and batch row at once; bias added a single time.
    xs2d = xs_ref[...].reshape(T * BB, E)
    xpre_ref[...] = (
        jnp.dot(xs2d, wx_ref[...], preferred_element_type=jnp.float32)
        + b_ref[...])

    # Hidden-side weights held in vregs across the recurrence, bf16 (MXU-native,
    # halves vreg footprint); accumulation stays f32.
    wh_bf16 = wh_ref[...].astype(jnp.bfloat16)

    # Phase 2 (recurrent): only h @ wh + precomputed[t] remains per step.
    def step(t, carry):
        h, c = carry                                        # (BB, H) f32
        base = pl.multiple_of(t * BB, BB)
        preact = (xpre_ref[pl.ds(base, BB), :]
                  + jnp.dot(h.astype(jnp.bfloat16), wh_bf16,
                            preferred_element_type=jnp.float32))   # (BB, 4H) f32

        # One full-width EUP sigmoid pass covers f, i, o AND the candidate
        # (candidate lanes were pre-scaled by 2: tanh(z) = 2*sigmoid(2z) - 1).
        sig = jax.nn.sigmoid(preact)
        forget_gate = sig[:, 0 * H:1 * H]
        input_gate = sig[:, 1 * H:2 * H]
        output_gate = sig[:, 2 * H:3 * H]
        candidate = 2.0 * sig[:, 3 * H:4 * H] - 1.0          # VALU, no extra EUP pass

        c_new = input_gate * candidate + c * forget_gate
        h_new = output_gate * jnp.tanh(c_new)                # the one remaining tanh

        # Single lane-dense store per step: [h | c] in one (BB, 2H) slab.
        hc_new = jnp.concatenate([h_new, c_new], axis=-1).astype(hc_ref.dtype)
        hc_ref[pl.ds(t, 1), :, :] = hc_new[None, :, :]
        return (h_new, c_new)

    lax.fori_loop(0, T, step, (h0_ref[...], c0_ref[...]), unroll=min(T, 8))


def lstm_sequence(xs, h0, c0, wx, wh, b, *, batch_block=8):
    """Apply LSTMCell.forward sequentially over time for a batch of independent
    sequences, inside one pallas_call.

    xs : (T, B, EMBED) time-major inputs; h0, c0 : (B, HIDDEN).
    Returns (h_all, c_all), each (T, B, HIDDEN).
    """
    T, B, E = xs.shape
    H = HIDDEN
    bb = batch_block if (B % batch_block == 0) else B
    nb = B // bb

    # Fold tanh(z) = 2*sigmoid(2z) - 1 into the fused sigmoid pass: scale the
    # candidate-gate columns (lanes 3H:4H) by 2 once, outside the kernel.
    # (In production this would be baked into the stored fused weights.)
    scale = jnp.concatenate(
        [jnp.ones((1, 3 * H), jnp.float32), jnp.full((1, H), 2.0, jnp.float32)],
        axis=1)
    wx_s = wx * scale
    wh_s = wh * scale
    b_s = b * scale

    # TODO(synk): for very long sequences, add a second ("arbitrary") grid axis tiling
    # the time dimension with h/c carried in persistent scratch, so xs/hc/xpre need not
    # be fully VMEM-resident (matters for T >~ tens of thousands; also set
    # vmem_limit_bytes there).
    hc = pl.pallas_call(
        lstm_seq_kernel,
        out_shape=jax.ShapeDtypeStruct((T, B, 2 * H), jnp.float32),
        grid_spec=pltpu.PrefetchScalarGridSpec(
            num_scalar_prefetch=0,
            grid=(nb,),
            in_specs=[
                pl.BlockSpec((T, bb, E), lambda bi: (0, bi, 0)),          # xs
                pl.BlockSpec((bb, H), lambda bi: (bi, 0)),                # h0
                pl.BlockSpec((bb, H), lambda bi: (bi, 0)),                # c0
                pl.BlockSpec((E, NGATES * H), lambda bi: (0, 0)),         # wx
                pl.BlockSpec((H, NGATES * H), lambda bi: (0, 0)),         # wh
                pl.BlockSpec((1, NGATES * H), lambda bi: (0, 0)),         # b
            ],
            out_specs=pl.BlockSpec((T, bb, 2 * H), lambda bi: (0, bi, 0)),
            scratch_shapes=[pltpu.VMEM((T * bb, NGATES * H), jnp.float32)],
        ),
        # v7x: independent batch blocks are sharded across the two TensorCores.
        compiler_params=pltpu.CompilerParams(dimension_semantics=("parallel",)),
    )(xs, h0, c0, wx_s, wh_s, b_s)

    h_all = hc[:, :, :H]
    c_all = hc[:, :, H:]
    return h_all, c_all


def lstm_cell(x, previous_hidden, previous_context, wx, wh, b):
    """Single-step wrapper matching the original LSTMCell.forward -> (hidden, context)."""
    xs = x.reshape(1, 1, EMBED)                   # (T=1, B=1, EMBED)
    h0 = previous_hidden.reshape(1, HIDDEN)
    c0 = previous_context.reshape(1, HIDDEN)
    h_all, c_all = lstm_sequence(xs, h0, c0, wx, wh, b, batch_block=1)
    return h_all[0], c_all[0]                     # each (1, HIDDEN), like the torch module


def init_params(key):
    """Deterministic init mimicking PyTorch nn.Linear (U(-1/sqrt(fan_in), +)).

    Returns fused, pre-transposed weights (gate order f, i, o, g along lanes):
      wx: (EMBED, 4*HIDDEN)   input-side weights
      wh: (HIDDEN, 4*HIDDEN)  hidden-side weights
      b : (1, 4*HIDDEN)       fused (input-side + hidden-side) biases
    """
    keys = jax.random.split(key, 16)
    k_it = iter(keys)

    def linear(k_w, k_b, fan_in, fan_out):
        bound = 1.0 / jnp.sqrt(fan_in)
        w = jax.random.uniform(k_w, (fan_out, fan_in), jnp.float32, -bound, bound)
        bias = jax.random.uniform(k_b, (fan_out,), jnp.float32, -bound, bound)
        return w, bias

    wx_cols, wh_cols, b_cols = [], [], []
    for _gate in range(NGATES):  # forget, input_gate, output_gate, candidate
        w_in, b_in = linear(next(k_it), next(k_it), EMBED, HIDDEN)
        w_hid, b_hid = linear(next(k_it), next(k_it), HIDDEN, HIDDEN)
        wx_cols.append(w_in.T)                        # (EMBED, HIDDEN)
        wh_cols.append(w_hid.T)                       # (HIDDEN, HIDDEN)
        b_cols.append((b_in + b_hid).reshape(1, HIDDEN))

    wx = jnp.concatenate(wx_cols, axis=1)             # (32, 128)
    wh = jnp.concatenate(wh_cols, axis=1)             # (32, 128)
    b = jnp.concatenate(b_cols, axis=1)               # (1, 128)
    return wx, wh, b


def lstm_sequence_ref(xs, h0, c0, wx, wh, b):
    """Pure-JAX f32 reference: PyTorch LSTMCell.forward applied per timestep (batched)."""
    H = HIDDEN
    h, c = h0, c0
    hs, cs = [], []
    for t in range(xs.shape[0]):
        pre = xs[t] @ wx + h @ wh + b
        forget_gate = jax.nn.sigmoid(pre[:, 0 * H:1 * H])
        context_after_forgetting = c * forget_gate
        input_gate = jax.nn.sigmoid(pre[:, 1 * H:2 * H])
        input_ = jnp.tanh(pre[:, 3 * H:4 * H])
        context = input_gate * input_ + context_after_forgetting
        output_gate = jax.nn.sigmoid(pre[:, 2 * H:3 * H])
        h = output_gate * jnp.tanh(context)
        c = context
        hs.append(h)
        cs.append(c)
    return jnp.stack(hs, axis=0), jnp.stack(cs, axis=0)


if __name__ == "__main__":
    T, B = 8, 16   # 16 independent sequences -> 2 batch blocks of 8 (parallel grid axis)
    key = jax.random.PRNGKey(0)
    k_params, k_x, k_h, k_c = jax.random.split(key, 4)

    wx, wh, b = init_params(k_params)

    xs = jax.random.normal(k_x, (T, B, EMBED), jnp.float32)    # time-major inputs
    h0 = jax.random.normal(k_h, (B, HIDDEN), jnp.float32)
    c0 = jax.random.normal(k_c, (B, HIDDEN), jnp.float32)

    # Fused batched-sequence kernel (the main entry point).
    h_all, c_all = lstm_sequence(xs, h0, c0, wx, wh, b)
    h_all = jax.block_until_ready(h_all)
    c_all = jax.block_until_ready(c_all)

    h_ref, c_ref = lstm_sequence_ref(xs, h0, c0, wx, wh, b)
    assert h_all.shape == (T, B, HIDDEN) and c_all.shape == (T, B, HIDDEN)
    # Tolerance loosened for the bf16 recurrent-matmul operands (f32 accumulation).
    assert jnp.allclose(h_all, h_ref, atol=5e-2, rtol=5e-2)
    assert jnp.allclose(c_all, c_ref, atol=5e-2, rtol=5e-2)

    # Single-step call matching the original module signature exactly.
    h1, c1 = lstm_cell(xs[0, 0], h0[0], c0[0], wx, wh, b)
    h1 = jax.block_until_ready(h1)
    c1 = jax.block_until_ready(c1)
    assert h1.shape == (1, HIDDEN) and c1.shape == (1, HIDDEN)
    assert jnp.allclose(h1, h_ref[0, 0:1], atol=5e-2, rtol=5e-2)
    assert jnp.allclose(c1, c_ref[0, 0:1], atol=5e-2, rtol=5e-2)

    print("KERNEL_OK")
</pallas_src>

<mosaic_0001>
module attributes {stable_mosaic.version = 11 : i64} {
  func.func @lstm_seq_kernel(%arg0: i32, %arg1: memref<8x8x32xf32, #tpu.memory_space<vmem>>, %arg2: memref<8x32xf32, #tpu.memory_space<vmem>>, %arg3: memref<8x32xf32, #tpu.memory_space<vmem>>, %arg4: memref<32x128xf32, #tpu.memory_space<vmem>>, %arg5: memref<32x128xf32, #tpu.memory_space<vmem>>, %arg6: memref<1x128xf32, #tpu.memory_space<vmem>>, %arg7: memref<8x8x64xf32, #tpu.memory_space<vmem>>, %arg8: memref<64x128xf32, #tpu.memory_space<vmem>>) attributes {dimension_semantics = [#tpu.dimension_semantics<parallel>], iteration_bounds = array<i64: 2>, scalar_prefetch = 0 : i64, scratch_operands = 1 : i64, tpu.core_type = #tpu.core_type<tc>, window_params = [{transform_indices = @transform_0, window_bounds = array<i64: 8, 8, 32>}, {transform_indices = @transform_1, window_bounds = array<i64: 8, 32>}, {transform_indices = @transform_2, window_bounds = array<i64: 8, 32>}, {pipeline_mode = #tpu.pipeline_mode<synchronous>, transform_indices = @transform_3, window_bounds = array<i64: 32, 128>}, {pipeline_mode = #tpu.pipeline_mode<synchronous>, transform_indices = @transform_4, window_bounds = array<i64: 32, 128>}, {pipeline_mode = #tpu.pipeline_mode<synchronous>, transform_indices = @transform_5, window_bounds = array<i64: 1, 128>}, {transform_indices = @transform_6, window_bounds = array<i64: 8, 8, 64>}]} {
    %c0 = arith.constant 0 : index
    %c0_0 = arith.constant 0 : index
    %c0_1 = arith.constant 0 : index
    %0 = vector.load %arg1[%c0, %c0_0, %c0_1] : memref<8x8x32xf32, #tpu.memory_space<vmem>>, vector<8x8x32xf32>
    %1 = vector.shape_cast %0 : vector<8x8x32xf32> to vector<64x32xf32>
    %c0_2 = arith.constant 0 : index
    %c0_3 = arith.constant 0 : index
    %2 = vector.load %arg4[%c0_2, %c0_3] : memref<32x128xf32, #tpu.memory_space<vmem>>, vector<32x128xf32>
    %cst = arith.constant dense<0.000000e+00> : vector<64x128xf32>
    %3 = tpu.matmul %1, %2, %cst {dimension_numbers = #tpu.dot_dimension_numbers<[1], [0], [0], [1], [0, 0, 1, 1], [], []>} : vector<64x32xf32>, vector<32x128xf32>, vector<64x128xf32> -> vector<64x128xf32>
    %c0_4 = arith.constant 0 : index
    %c0_5 = arith.constant 0 : index
    %4 = vector.load %arg6[%c0_4, %c0_5] : memref<1x128xf32, #tpu.memory_space<vmem>>, vector<1x128xf32>
    %5 = vector.broadcast %4 : vector<1x128xf32> to vector<64x128xf32>
    %6 = arith.addf %3, %5 : vector<64x128xf32>
    %c0_6 = arith.constant 0 : index
    %c0_7 = arith.constant 0 : index
    %7 = vector.load %arg8[%c0_6, %c0_7] : memref<64x128xf32, #tpu.memory_space<vmem>>, vector<64x128xf32>
    tpu.vector_store %arg8[%c0_6, %c0_7], %6 {strides = array<i32>} : memref<64x128xf32, #tpu.memory_space<vmem>>, vector<64x128xf32>,
    %c0_8 = arith.constant 0 : index
    %c0_9 = arith.constant 0 : index
    %8 = vector.load %arg5[%c0_8, %c0_9] : memref<32x128xf32, #tpu.memory_space<vmem>>, vector<32x128xf32>
    %9 = arith.truncf %8 : vector<32x128xf32> to vector<32x128xbf16>
    %c0_10 = arith.constant 0 : index
    %c0_11 = arith.constant 0 : index
    %10 = vector.load %arg2[%c0_10, %c0_11] : memref<8x32xf32, #tpu.memory_space<vmem>>, vector<8x32xf32>
    %c0_12 = arith.constant 0 : index
    %c0_13 = arith.constant 0 : index
    %11 = vector.load %arg3[%c0_12, %c0_13] : memref<8x32xf32, #tpu.memory_space<vmem>>, vector<8x32xf32>
    %c0_i32 = arith.constant 0 : i32
    %c8_i32 = arith.constant 8 : i32
    %12 = arith.muli %c0_i32, %c8_i32 : i32
    %13 = tpu.assume_multiple %12, 8 : i32
    %14 = arith.index_cast %13 : i32 to index
    %c0_14 = arith.constant 0 : index
    %15 = vector.load %arg8[%14, %c0_14] : memref<64x128xf32, #tpu.memory_space<vmem>>, vector<8x128xf32>
    %16 = arith.truncf %10 : vector<8x32xf32> to vector<8x32xbf16>
    %cst_15 = arith.constant dense<0.000000e+00> : vector<8x128xf32>
    %17 = tpu.matmul %16, %9, %cst_15 {dimension_numbers = #tpu.dot_dimension_numbers<[1], [0], [0], [1], [0, 0, 1, 1], [], []>} : vector<8x32xbf16>, vector<32x128xbf16>, vector<8x128xf32> -> vector<8x128xf32>
    %18 = arith.addf %15, %17 : vector<8x128xf32>
    %19 = arith.negf %18 : vector<8x128xf32>
    %20 = math.exp %19 : vector<8x128xf32>
    %cst_16 = arith.constant 1.000000e+00 : f32
    %21 = vector.broadcast %cst_16 : f32 to vector<8x128xf32>
    %22 = arith.addf %21, %20 : vector<8x128xf32>
    %23 = arith.divf %21, %22 : vector<8x128xf32>
    %24 = vector.extract_strided_slice %23 {offsets = [0, 0], sizes = [8, 32], strides = [1, 1]} : vector<8x128xf32> to vector<8x32xf32>
    %25 = vector.extract_strided_slice %23 {offsets = [0, 32], sizes = [8, 32], strides = [1, 1]} : vector<8x128xf32> to vector<8x32xf32>
    %26 = vector.extract_strided_slice %23 {offsets = [0, 64], sizes = [8, 32], strides = [1, 1]} : vector<8x128xf32> to vector<8x32xf32>
    %27 = vector.extract_strided_slice %23 {offsets = [0, 96], sizes = [8, 32], strides = [1, 1]} : vector<8x128xf32> to vector<8x32xf32>
    %cst_17 = arith.constant 2.000000e+00 : f32
    %28 = vector.broadcast %cst_17 : f32 to vector<8x32xf32>
    %29 = arith.mulf %28, %27 : vector<8x32xf32>
    %cst_18 = arith.constant 1.000000e+00 : f32
    %30 = vector.broadcast %cst_18 : f32 to vector<8x32xf32>
    %31 = arith.subf %29, %30 : vector<8x32xf32>
    %32 = arith.mulf %25, %31 : vector<8x32xf32>
    %33 = arith.mulf %11, %24 : vector<8x32xf32>
    %34 = arith.addf %32, %33 : vector<8x32xf32>
    %35 = math.tanh %34 : vector<8x32xf32>
    %36 = arith.mulf %26, %35 : vector<8x32xf32>
    %37 = tpu.concatenate %36, %34 in 1 : vector<8x32xf32>, vector<8x32xf32> -> vector<8x64xf32>
    %38 = vector.shape_cast %37 : vector<8x64xf32> to vector<1x8x64xf32>
    %39 = arith.index_cast %c0_i32 : i32 to index
    %c0_19 = arith.constant 0 : index
    %c0_20 = arith.constant 0 : index
    %40 = vector.load %arg7[%39, %c0_19, %c0_20] : memref<8x8x64xf32, #tpu.memory_space<vmem>>, vector<1x8x64xf32>
    tpu.vector_store %arg7[%39, %c0_19, %c0_20], %38 {strides = array<i32>} : memref<8x8x64xf32, #tpu.memory_space<vmem>>, vector<1x8x64xf32>,
    %c1_i32 = arith.constant 1 : i32
    %c8_i32_21 = arith.constant 8 : i32
    %41 = arith.muli %c1_i32, %c8_i32_21 : i32
    %42 = tpu.assume_multiple %41, 8 : i32
    %43 = arith.index_cast %42 : i32 to index
    %c0_22 = arith.constant 0 : index
    %44 = vector.load %arg8[%43, %c0_22] : memref<64x128xf32, #tpu.memory_space<vmem>>, vector<8x128xf32>
    %45 = arith.truncf %36 : vector<8x32xf32> to vector<8x32xbf16>
    %cst_23 = arith.constant dense<0.000000e+00> : vector<8x128xf32>
    %46 = tpu.matmul %45, %9, %cst_23 {dimension_numbers = #tpu.dot_dimension_numbers<[1], [0], [0], [1], [0, 0, 1, 1], [], []>} : vector<8x32xbf16>, vector<32x128xbf16>, vector<8x128xf32> -> vector<8x128xf32>
    %47 = arith.addf %44, %46 : vector<8x128xf32>
    %48 = arith.negf %47 : vector<8x128xf32>
    %49 = math.exp %48 : vector<8x128xf32>
    %cst_24 = arith.constant 1.000000e+00 : f32
    %50 = vector.broadcast %cst_24 : f32 to vector<8x128xf32>
    %51 = arith.addf %50, %49 : vector<8x128xf32>
    %52 = arith.divf %50, %51 : vector<8x128xf32>
    %53 = vector.extract_strided_slice %52 {offsets = [0, 0], sizes = [8, 32], strides = [1, 1]} : vector<8x128xf32> to vector<8x32xf32>
    %54 = vector.extract_strided_slice %52 {offsets = [0, 32], sizes = [8, 32], strides = [1, 1]} : vector<8x128xf32> to vector<8x32xf32>
    %55 = vector.extract_strided_slice %52 {offsets = [0, 64], sizes = [8, 32], strides = [1, 1]} : vector<8x128xf32> to vector<8x32xf32>
    %56 = vector.extract_strided_slice %52 {offsets = [0, 96], sizes = [8, 32], strides = [1, 1]} : vector<8x128xf32> to vector<8x32xf32>
    %cst_25 = arith.constant 2.000000e+00 : f32
    %57 = vector.broadcast %cst_25 : f32 to vector<8x32xf32>
    %58 = arith.mulf %57, %56 : vector<8x32xf32>
    %cst_26 = arith.constant 1.000000e+00 : f32
    %59 = vector.broadcast %cst_26 : f32 to vector<8x32xf32>
    %60 = arith.subf %58, %59 : vector<8x32xf32>
    %61 = arith.mulf %54, %60 : vector<8x32xf32>
    %62 = arith.mulf %34, %53 : vector<8x32xf32>
    %63 = arith.addf %61, %62 : vector<8x32xf32>
    %64 = math.tanh %63 : vector<8x32xf32>
    %65 = arith.mulf %55, %64 : vector<8x32xf32>
    %66 = tpu.concatenate %65, %63 in 1 : vector<8x32xf32>, vector<8x32xf32> -> vector<8x64xf32>
    %67 = vector.shape_cast %66 : vector<8x64xf32> to vector<1x8x64xf32>
    %68 = arith.index_cast %c1_i32 : i32 to index
    %c0_27 = arith.constant 0 : index
    %c0_28 = arith.constant 0 : index
    %69 = vector.load %arg7[%68, %c0_27, %c0_28] : memref<8x8x64xf32, #tpu.memory_space<vmem>>, vector<1x8x64xf32>
    tpu.vector_store %arg7[%68, %c0_27, %c0_28], %67 {strides = array<i32>} : memref<8x8x64xf32, #tpu.memory_space<vmem>>, vector<1x8x64xf32>,
    %c2_i32 = arith.constant 2 : i32
    %c8_i32_29 = arith.constant 8 : i32
    %70 = arith.muli %c2_i32, %c8_i32_29 : i32
    %71 = tpu.assume_multiple %70, 8 : i32
    %72 = arith.index_cast %71 : i32 to index
    %c0_30 = arith.constant 0 : index
    %73 = vector.load %arg8[%72, %c0_30] : memref<64x128xf32, #tpu.memory_space<vmem>>, vector<8x128xf32>
    %74 = arith.truncf %65 : vector<8x32xf32> to vector<8x32xbf16>
    %cst_31 = arith.constant dense<0.000000e+00> : vector<8x128xf32>
    %75 = tpu.matmul %74, %9, %cst_31 {dimension_numbers = #tpu.dot_dimension_numbers<[1], [0], [0], [1], [0, 0, 1, 1], [], []>} : vector<8x32xbf16>, vector<32x128xbf16>, vector<8x128xf32> -> vector<8x128xf32>
    %76 = arith.addf %73, %75 : vector<8x128xf32>
    %77 = arith.negf %76 : vector<8x128xf32>
    %78 = math.exp %77 : vector<8x128xf32>
    %cst_32 = arith.constant 1.000000e+00 : f32
    %79 = vector.broadcast %cst_32 : f32 to vector<8x128xf32>
    %80 = arith.addf %79, %78 : vector<8x128xf32>
    %81 = arith.divf %79, %80 : vector<8x128xf32>
    %82 = vector.extract_strided_slice %81 {offsets = [0, 0], sizes = [8, 32], strides = [1, 1]} : vector<8x128xf32> to vector<8x32xf32>
    %83 = vector.extract_strided_slice %81 {offsets = [0, 32], sizes = [8, 32], strides = [1, 1]} : vector<8x128xf32> to vector<8x32xf32>
    %84 = vector.extract_strided_slice %81 {offsets = [0, 64], sizes = [8, 32], strides = [1, 1]} : vector<8x128xf32> to vector<8x32xf32>
    %85 = vector.extract_strided_slice %81 {offsets = [0, 96], sizes = [8, 32], strides = [1, 1]} : vector<8x128xf32> to vector<8x32xf32>
    %cst_33 = arith.constant 2.000000e+00 : f32
    %86 = vector.broadcast %cst_33 : f32 to vector<8x32xf32>
    %87 = arith.mulf %86, %85 : vector<8x32xf32>
    %cst_34 = arith.constant 1.000000e+00 : f32
    %88 = vector.broadcast %cst_34 : f32 to vector<8x32xf32>
    %89 = arith.subf %87, %88 : vector<8x32xf32>
    %90 = arith.mulf %83, %89 : vector<8x32xf32>
    %91 = arith.mulf %63, %82 : vector<8x32xf32>
    %92 = arith.addf %90, %91 : vector<8x32xf32>
    %93 = math.tanh %92 : vector<8x32xf32>
    %94 = arith.mulf %84, %93 : vector<8x32xf32>
    %95 = tpu.concatenate %94, %92 in 1 : vector<8x32xf32>, vector<8x32xf32> -> vector<8x64xf32>
    %96 = vector.shape_cast %95 : vector<8x64xf32> to vector<1x8x64xf32>
    %97 = arith.index_cast %c2_i32 : i32 to index
    %c0_35 = arith.constant 0 : index
    %c0_36 = arith.constant 0 : index
    %98 = vector.load %arg7[%97, %c0_35, %c0_36] : memref<8x8x64xf32, #tpu.memory_space<vmem>>, vector<1x8x64xf32>
    tpu.vector_store %arg7[%97, %c0_35, %c0_36], %96 {strides = array<i32>} : memref<8x8x64xf32, #tpu.memory_space<vmem>>, vector<1x8x64xf32>,
    %c3_i32 = arith.constant 3 : i32
    %c8_i32_37 = arith.constant 8 : i32
    %99 = arith.muli %c3_i32, %c8_i32_37 : i32
    %100 = tpu.assume_multiple %99, 8 : i32
    %101 = arith.index_cast %100 : i32 to index
    %c0_38 = arith.constant 0 : index
    %102 = vector.load %arg8[%101, %c0_38] : memref<64x128xf32, #tpu.memory_space<vmem>>, vector<8x128xf32>
    %103 = arith.truncf %94 : vector<8x32xf32> to vector<8x32xbf16>
    %cst_39 = arith.constant dense<0.000000e+00> : vector<8x128xf32>
    %104 = tpu.matmul %103, %9, %cst_39 {dimension_numbers = #tpu.dot_dimension_numbers<[1], [0], [0], [1], [0, 0, 1, 1], [], []>} : vector<8x32xbf16>, vector<32x128xbf16>, vector<8x128xf32> -> vector<8x128xf32>
    %105 = arith.addf %102, %104 : vector<8x128xf32>
    %106 = arith.negf %105 : vector<8x128xf32>
    %107 = math.exp %106 : vector<8x128xf32>
    %cst_40 = arith.constant 1.000000e+00 : f32
    %108 = vector.broadcast %cst_40 : f32 to vector<8x128xf32>
    %109 = arith.addf %108, %107 : vector<8x128xf32>
    %110 = arith.divf %108, %109 : vector<8x128xf32>
    %111 = vector.extract_strided_slice %110 {offsets = [0, 0], sizes = [8, 32], strides = [1, 1]} : vector<8x128xf32> to vector<8x32xf32>
    %112 = vector.extract_strided_slice %110 {offsets = [0, 32], sizes = [8, 32], strides = [1, 1]} : vector<8x128xf32> to vector<8x32xf32>
    %113 = vector.extract_strided_slice %110 {offsets = [0, 64], sizes = [8, 32], strides = [1, 1]} : vector<8x128xf32> to vector<8x32xf32>
    %114 = vector.extract_strided_slice %110 {offsets = [0, 96], sizes = [8, 32], strides = [1, 1]} : vector<8x128xf32> to vector<8x32xf32>
    %cst_41 = arith.constant 2.000000e+00 : f32
    %115 = vector.broadcast %cst_41 : f32 to vector<8x32xf32>
    %116 = arith.mulf %115, %114 : vector<8x32xf32>
    %cst_42 = arith.constant 1.000000e+00 : f32
    %117 = vector.broadcast %cst_42 : f32 to vector<8x32xf32>
    %118 = arith.subf %116, %117 : vector<8x32xf32>
    %119 = arith.mulf %112, %118 : vector<8x32xf32>
    %120 = arith.mulf %92, %111 : vector<8x32xf32>
    %121 = arith.addf %119, %120 : vector<8x32xf32>
    %122 = math.tanh %121 : vector<8x32xf32>
    %123 = arith.mulf %113, %122 : vector<8x32xf32>
    %124 = tpu.concatenate %123, %121 in 1 : vector<8x32xf32>, vector<8x32xf32> -> vector<8x64xf32>
    %125 = vector.shape_cast %124 : vector<8x64xf32> to vector<1x8x64xf32>
    %126 = arith.index_cast %c3_i32 : i32 to index
    %c0_43 = arith.constant 0 : index
    %c0_44 = arith.constant 0 : index
    %127 = vector.load %arg7[%126, %c0_43, %c0_44] : memref<8x8x64xf32, #tpu.memory_space<vmem>>, vector<1x8x64xf32>
    tpu.vector_store %arg7[%126, %c0_43, %c0_44], %125 {strides = array<i32>} : memref<8x8x64xf32, #tpu.memory_space<vmem>>, vector<1x8x64xf32>,
    %c4_i32 = arith.constant 4 : i32
    %c8_i32_45 = arith.constant 8 : i32
    %128 = arith.muli %c4_i32, %c8_i32_45 : i32
    %129 = tpu.assume_multiple %128, 8 : i32
    %130 = arith.index_cast %129 : i32 to index
    %c0_46 = arith.constant 0 : index
    %131 = vector.load %arg8[%130, %c0_46] : memref<64x128xf32, #tpu.memory_space<vmem>>, vector<8x128xf32>
    %132 = arith.truncf %123 : vector<8x32xf32> to vector<8x32xbf16>
    %cst_47 = arith.constant dense<0.000000e+00> : vector<8x128xf32>
    %133 = tpu.matmul %132, %9, %cst_47 {dimension_numbers = #tpu.dot_dimension_numbers<[1], [0], [0], [1], [0, 0, 1, 1], [], []>} : vector<8x32xbf16>, vector<32x128xbf16>, vector<8x128xf32> -> vector<8x128xf32>
    %134 = arith.addf %131, %133 : vector<8x128xf32>
    %135 = arith.negf %134 : vector<8x128xf32>
    %136 = math.exp %135 : vector<8x128xf32>
    %cst_48 = arith.constant 1.000000e+00 : f32
    %137 = vector.broadcast %cst_48 : f32 to vector<8x128xf32>
    %138 = arith.addf %137, %136 : vector<8x128xf32>
    %139 = arith.divf %137, %138 : vector<8x128xf32>
    %140 = vector.extract_strided_slice %139 {offsets = [0, 0], sizes = [8, 32], strides = [1, 1]} : vector<8x128xf32> to vector<8x32xf32>
    %141 = vector.extract_strided_slice %139 {offsets = [0, 32], sizes = [8, 32], strides = [1, 1]} : vector<8x128xf32> to vector<8x32xf32>
    %142 = vector.extract_strided_slice %139 {offsets = [0, 64], sizes = [8, 32], strides = [1, 1]} : vector<8x128xf32> to vector<8x32xf32>
    %143 = vector.extract_strided_slice %139 {offsets = [0, 96], sizes = [8, 32], strides = [1, 1]} : vector<8x128xf32> to vector<8x32xf32>
    %cst_49 = arith.constant 2.000000e+00 : f32
    %144 = vector.broadcast %cst_49 : f32 to vector<8x32xf32>
    %145 = arith.mulf %144, %143 : vector<8x32xf32>
    %cst_50 = arith.constant 1.000000e+00 : f32
    %146 = vector.broadcast %cst_50 : f32 to vector<8x32xf32>
    %147 = arith.subf %145, %146 : vector<8x32xf32>
    %148 = arith.mulf %141, %147 : vector<8x32xf32>
    %149 = arith.mulf %121, %140 : vector<8x32xf32>
    %150 = arith.addf %148, %149 : vector<8x32xf32>
    %151 = math.tanh %150 : vector<8x32xf32>
    %152 = arith.mulf %142, %151 : vector<8x32xf32>
    %153 = tpu.concatenate %152, %150 in 1 : vector<8x32xf32>, vector<8x32xf32> -> vector<8x64xf32>
    %154 = vector.shape_cast %153 : vector<8x64xf32> to vector<1x8x64xf32>
    %155 = arith.index_cast %c4_i32 : i32 to index
    %c0_51 = arith.constant 0 : index
    %c0_52 = arith.constant 0 : index
    %156 = vector.load %arg7[%155, %c0_51, %c0_52] : memref<8x8x64xf32, #tpu.memory_space<vmem>>, vector<1x8x64xf32>
    tpu.vector_store %arg7[%155, %c0_51, %c0_52], %154 {strides = array<i32>} : memref<8x8x64xf32, #tpu.memory_space<vmem>>, vector<1x8x64xf32>,
    %c5_i32 = arith.constant 5 : i32
    %c8_i32_53 = arith.constant 8 : i32
    %157 = arith.muli %c5_i32, %c8_i32_53 : i32
    %158 = tpu.assume_multiple %157, 8 : i32
    %159 = arith.index_cast %158 : i32 to index
    %c0_54 = arith.constant 0 : index
    %160 = vector.load %arg8[%159, %c0_54] : memref<64x128xf32, #tpu.memory_space<vmem>>, vector<8x128xf32>
    %161 = arith.truncf %152 : vector<8x32xf32> to vector<8x32xbf16>
    %cst_55 = arith.constant dense<0.000000e+00> : vector<8x128xf32>
    %162 = tpu.matmul %161, %9, %cst_55 {dimension_numbers = #tpu.dot_dimension_numbers<[1], [0], [0], [1], [0, 0, 1, 1], [], []>} : vector<8x32xbf16>, vector<32x128xbf16>, vector<8x128xf32> -> vector<8x128xf32>
    %163 = arith.addf %160, %162 : vector<8x128xf32>
    %164 = arith.negf %163 : vector<8x128xf32>
    %165 = math.exp %164 : vector<8x128xf32>
    %cst_56 = arith.constant 1.000000e+00 : f32
    %166 = vector.broadcast %cst_56 : f32 to vector<8x128xf32>
    %167 = arith.addf %166, %165 : vector<8x128xf32>
    %168 = arith.divf %166, %167 : vector<8x128xf32>
    %169 = vector.extract_strided_slice %168 {offsets = [0, 0], sizes = [8, 32], strides = [1, 1]} : vector<8x128xf32> to vector<8x32xf32>
    %170 = vector.extract_strided_slice %168 {offsets = [0, 32], sizes = [8, 32], strides = [1, 1]} : vector<8x128xf32> to vector<8x32xf32>
    %171 = vector.extract_strided_slice %168 {offsets = [0, 64], sizes = [8, 32], strides = [1, 1]} : vector<8x128xf32> to vector<8x32xf32>
    %172 = vector.extract_strided_slice %168 {offsets = [0, 96], sizes = [8, 32], strides = [1, 1]} : vector<8x128xf32> to vector<8x32xf32>
    %cst_57 = arith.constant 2.000000e+00 : f32
    %173 = vector.broadcast %cst_57 : f32 to vector<8x32xf32>
    %174 = arith.mulf %173, %172 : vector<8x32xf32>
    %cst_58 = arith.constant 1.000000e+00 : f32
    %175 = vector.broadcast %cst_58 : f32 to vector<8x32xf32>
    %176 = arith.subf %174, %175 : vector<8x32xf32>
    %177 = arith.mulf %170, %176 : vector<8x32xf32>
    %178 = arith.mulf %150, %169 : vector<8x32xf32>
    %179 = arith.addf %177, %178 : vector<8x32xf32>
    %180 = math.tanh %179 : vector<8x32xf32>
    %181 = arith.mulf %171, %180 : vector<8x32xf32>
    %182 = tpu.concatenate %181, %179 in 1 : vector<8x32xf32>, vector<8x32xf32> -> vector<8x64xf32>
    %183 = vector.shape_cast %182 : vector<8x64xf32> to vector<1x8x64xf32>
    %184 = arith.index_cast %c5_i32 : i32 to index
    %c0_59 = arith.constant 0 : index
    %c0_60 = arith.constant 0 : index
    %185 = vector.load %arg7[%184, %c0_59, %c0_60] : memref<8x8x64xf32, #tpu.memory_space<vmem>>, vector<1x8x64xf32>
    tpu.vector_store %arg7[%184, %c0_59, %c0_60], %183 {strides = array<i32>} : memref<8x8x64xf32, #tpu.memory_space<vmem>>, vector<1x8x64xf32>,
    %c6_i32 = arith.constant 6 : i32
    %c8_i32_61 = arith.constant 8 : i32
    %186 = arith.muli %c6_i32, %c8_i32_61 : i32
    %187 = tpu.assume_multiple %186, 8 : i32
    %188 = arith.index_cast %187 : i32 to index
    %c0_62 = arith.constant 0 : index
    %189 = vector.load %arg8[%188, %c0_62] : memref<64x128xf32, #tpu.memory_space<vmem>>, vector<8x128xf32>
    %190 = arith.truncf %181 : vector<8x32xf32> to vector<8x32xbf16>
    %cst_63 = arith.constant dense<0.000000e+00> : vector<8x128xf32>
    %191 = tpu.matmul %190, %9, %cst_63 {dimension_numbers = #tpu.dot_dimension_numbers<[1], [0], [0], [1], [0, 0, 1, 1], [], []>} : vector<8x32xbf16>, vector<32x128xbf16>, vector<8x128xf32> -> vector<8x128xf32>
    %192 = arith.addf %189, %191 : vector<8x128xf32>
    %193 = arith.negf %192 : vector<8x128xf32>
    %194 = math.exp %193 : vector<8x128xf32>
    %cst_64 = arith.constant 1.000000e+00 : f32
    %195 = vector.broadcast %cst_64 : f32 to vector<8x128xf32>
    %196 = arith.addf %195, %194 : vector<8x128xf32>
    %197 = arith.divf %195, %196 : vector<8x128xf32>
    %198 = vector.extract_strided_slice %197 {offsets = [0, 0], sizes = [8, 32], strides = [1, 1]} : vector<8x128xf32> to vector<8x32xf32>
    %199 = vector.extract_strided_slice %197 {offsets = [0, 32], sizes = [8, 32], strides = [1, 1]} : vector<8x128xf32> to vector<8x32xf32>
    %200 = vector.extract_strided_slice %197 {offsets = [0, 64], sizes = [8, 32], strides = [1, 1]} : vector<8x128xf32> to vector<8x32xf32>
    %201 = vector.extract_strided_slice %197 {offsets = [0, 96], sizes = [8, 32], strides = [1, 1]} : vector<8x128xf32> to vector<8x32xf32>
    %cst_65 = arith.constant 2.000000e+00 : f32
    %202 = vector.broadcast %cst_65 : f32 to vector<8x32xf32>
    %203 = arith.mulf %202, %201 : vector<8x32xf32>
    %cst_66 = arith.constant 1.000000e+00 : f32
    %204 = vector.broadcast %cst_66 : f32 to vector<8x32xf32>
    %205 = arith.subf %203, %204 : vector<8x32xf32>
    %206 = arith.mulf %199, %205 : vector<8x32xf32>
    %207 = arith.mulf %179, %198 : vector<8x32xf32>
    %208 = arith.addf %206, %207 : vector<8x32xf32>
    %209 = math.tanh %208 : vector<8x32xf32>
    %210 = arith.mulf %200, %209 : vector<8x32xf32>
    %211 = tpu.concatenate %210, %208 in 1 : vector<8x32xf32>, vector<8x32xf32> -> vector<8x64xf32>
    %212 = vector.shape_cast %211 : vector<8x64xf32> to vector<1x8x64xf32>
    %213 = arith.index_cast %c6_i32 : i32 to index
    %c0_67 = arith.constant 0 : index
    %c0_68 = arith.constant 0 : index
    %214 = vector.load %arg7[%213, %c0_67, %c0_68] : memref<8x8x64xf32, #tpu.memory_space<vmem>>, vector<1x8x64xf32>
    tpu.vector_store %arg7[%213, %c0_67, %c0_68], %212 {strides = array<i32>} : memref<8x8x64xf32, #tpu.memory_space<vmem>>, vector<1x8x64xf32>,
    %c7_i32 = arith.constant 7 : i32
    %c8_i32_69 = arith.constant 8 : i32
    %215 = arith.muli %c7_i32, %c8_i32_69 : i32
    %216 = tpu.assume_multiple %215, 8 : i32
    %217 = arith.index_cast %216 : i32 to index
    %c0_70 = arith.constant 0 : index
    %218 = vector.load %arg8[%217, %c0_70] : memref<64x128xf32, #tpu.memory_space<vmem>>, vector<8x128xf32>
    %219 = arith.truncf %210 : vector<8x32xf32> to vector<8x32xbf16>
    %cst_71 = arith.constant dense<0.000000e+00> : vector<8x128xf32>
    %220 = tpu.matmul %219, %9, %cst_71 {dimension_numbers = #tpu.dot_dimension_numbers<[1], [0], [0], [1], [0, 0, 1, 1], [], []>} : vector<8x32xbf16>, vector<32x128xbf16>, vector<8x128xf32> -> vector<8x128xf32>
    %221 = arith.addf %218, %220 : vector<8x128xf32>
    %222 = arith.negf %221 : vector<8x128xf32>
    %223 = math.exp %222 : vector<8x128xf32>
    %cst_72 = arith.constant 1.000000e+00 : f32
    %224 = vector.broadcast %cst_72 : f32 to vector<8x128xf32>
    %225 = arith.addf %224, %223 : vector<8x128xf32>
    %226 = arith.divf %224, %225 : vector<8x128xf32>
    %227 = vector.extract_strided_slice %226 {offsets = [0, 0], sizes = [8, 32], strides = [1, 1]} : vector<8x128xf32> to vector<8x32xf32>
    %228 = vector.extract_strided_slice %226 {offsets = [0, 32], sizes = [8, 32], strides = [1, 1]} : vector<8x128xf32> to vector<8x32xf32>
    %229 = vector.extract_strided_slice %226 {offsets = [0, 64], sizes = [8, 32], strides = [1, 1]} : vector<8x128xf32> to vector<8x32xf32>
    %230 = vector.extract_strided_slice %226 {offsets = [0, 96], sizes = [8, 32], strides = [1, 1]} : vector<8x128xf32> to vector<8x32xf32>
    %cst_73 = arith.constant 2.000000e+00 : f32
    %231 = vector.broadcast %cst_73 : f32 to vector<8x32xf32>
    %232 = arith.mulf %231, %230 : vector<8x32xf32>
    %cst_74 = arith.constant 1.000000e+00 : f32
    %233 = vector.broadcast %cst_74 : f32 to vector<8x32xf32>
    %234 = arith.subf %232, %233 : vector<8x32xf32>
    %235 = arith.mulf %228, %234 : vector<8x32xf32>
    %236 = arith.mulf %208, %227 : vector<8x32xf32>
    %237 = arith.addf %235, %236 : vector<8x32xf32>
    %238 = math.tanh %237 : vector<8x32xf32>
    %239 = arith.mulf %229, %238 : vector<8x32xf32>
    %240 = tpu.concatenate %239, %237 in 1 : vector<8x32xf32>, vector<8x32xf32> -> vector<8x64xf32>
    %241 = vector.shape_cast %240 : vector<8x64xf32> to vector<1x8x64xf32>
    %242 = arith.index_cast %c7_i32 : i32 to index
    %c0_75 = arith.constant 0 : index
    %c0_76 = arith.constant 0 : index
    %243 = vector.load %arg7[%242, %c0_75, %c0_76] : memref<8x8x64xf32, #tpu.memory_space<vmem>>, vector<1x8x64xf32>
    tpu.vector_store %arg7[%242, %c0_75, %c0_76], %241 {strides = array<i32>} : memref<8x8x64xf32, #tpu.memory_space<vmem>>, vector<1x8x64xf32>,
    %c8_i32_77 = arith.constant 8 : i32
    return
  }
  func.func @transform_0(%arg0: i32) -> (i32, i32, i32) {
    %c0_i32 = arith.constant 0 : i32
    %c0_i32_0 = arith.constant 0 : i32
    %c0_i32_1 = arith.constant 0 : i32
    return %c0_i32, %arg0, %c0_i32_0 : i32, i32, i32
  }
  func.func @transform_1(%arg0: i32) -> (i32, i32) {
    %c0_i32 = arith.constant 0 : i32
    %c0_i32_0 = arith.constant 0 : i32
    return %arg0, %c0_i32 : i32, i32
  }
  func.func @transform_2(%arg0: i32) -> (i32, i32) {
    %c0_i32 = arith.constant 0 : i32
    %c0_i32_0 = arith.constant 0 : i32
    return %arg0, %c0_i32 : i32, i32
  }
  func.func @transform_3(%arg0: i32) -> (i32, i32) {
    %c0_i32 = arith.constant 0 : i32
    %c0_i32_0 = arith.constant 0 : i32
    %c0_i32_1 = arith.constant 0 : i32
    return %c0_i32, %c0_i32_0 : i32, i32
  }
  func.func @transform_4(%arg0: i32) -> (i32, i32) {
    %c0_i32 = arith.constant 0 : i32
    %c0_i32_0 = arith.constant 0 : i32
    %c0_i32_1 = arith.constant 0 : i32
    return %c0_i32, %c0_i32_0 : i32, i32
  }
  func.func @transform_5(%arg0: i32) -> (i32, i32) {
    %c0_i32 = arith.constant 0 : i32
    %c0_i32_0 = arith.constant 0 : i32
    %c0_i32_1 = arith.constant 0 : i32
    return %c0_i32, %c0_i32_0 : i32, i32
  }
  func.func @transform_6(%arg0: i32) -> (i32, i32, i32) {
    %c0_i32 = arith.constant 0 : i32
    %c0_i32_0 = arith.constant 0 : i32
    %c0_i32_1 = arith.constant 0 : i32
    return %c0_i32, %arg0, %c0_i32_0 : i32, i32, i32
  }
}

</mosaic_0001>

<llo_original>
// kernel: tpu_custom_call.1
$region0: #{tpu_custom_call.1}
  #allocation0 [shape = 'u32[]', space=smem, size = 0x4, offset = 0x4, fixed_abs, tag = 'smem constant byte address 0x4 - core index']
  #allocation1 [shape = 'u32[72,128]{1,0:T(1,128)}', space=vmem, size = 0x9000, scoped, tag = 'internal scratch']
  #allocation2 [shape = 'f32[64,128]{1,0:T(8,128)}', space=vmem, size = 0x8000, scoped, tag = 'scratch operand']
  %s0 = inlined_call_operand.hbm [shape: f32[8,16,32], index: 0, kind: input, shape index: {}]
  %s1 = inlined_call_operand.hbm [shape: f32[16,32], index: 1, kind: input, shape index: {}]
  %s2 = inlined_call_operand.hbm [shape: f32[16,32], index: 2, kind: input, shape index: {}]
  %s3 = inlined_call_operand.hbm [shape: f32[32,128], index: 3, kind: input, shape index: {}]
  %s4 = inlined_call_operand.hbm [shape: f32[32,128], index: 4, kind: input, shape index: {}]
  %s5 = inlined_call_operand.vmem [shape: f32[1,128], index: 5, kind: input, shape index: {}]
  %s6 = inlined_call_operand.hbm [shape: f32[8,16,64], index: 6, kind: output, shape index: {}]
  %s7 = sld [smem:[#allocation0]]
  $region77: #{tpu_custom_call.1} parent=0
    _
  %s9 = ssub.s32 1, %s7
  %s10 = scalar_select 0, %s9, %s7
  $region1: #{tpu_custom_call.1} parent=0
    #allocation3 [shape = 'u8[65536]{0}', space=vmem, size = 0x10000, scoped, tag = 'input window, operand 0']
    #allocation4 [shape = 's32[2]{0}', space=sflag, size = 0x8, scoped, tag = 'scoped memory for tpu_custom_call.1']
    #allocation5 [shape = 's32[2]{0}', space=sflag, size = 0x8, scoped, tag = 'scoped memory for tpu_custom_call.1']
    #allocation6 [shape = 'u8[8192]{0}', space=vmem, size = 0x2000, scoped, tag = 'input window, operand 1']
    #allocation7 [shape = 's32[2]{0}', space=sflag, size = 0x8, scoped, tag = 'scoped memory for tpu_custom_call.1']
    #allocation8 [shape = 'u8[8192]{0}', space=vmem, size = 0x2000, scoped, tag = 'input window, operand 2']
    #allocation9 [shape = 'u8[16384]{0}', space=vmem, size = 0x4000, scoped, tag = 'input window, operand 3, single buffered']
    #allocation10 [shape = 's32[1]{0}', space=sflag, size = 0x4, scoped, tag = 'scoped memory for tpu_custom_call.1']
    #allocation11 [shape = 'u8[16384]{0}', space=vmem, size = 0x4000, scoped, tag = 'input window, operand 4, single buffered']
    #allocation12 [shape = 'u8[65536]{0}', space=vmem, size = 0x10000, scoped, tag = 'output window, operand 0']
    %11 = vsyncpa [#allocation4], 0
    %s12 = scalar_lea.sflag [#allocation4], 1
    %13 = vsyncpa %s12, 0
    %14 = vsyncpa [#allocation7], 0
    %s15 = scalar_lea.sflag [#allocation7], 1
    %16 = vsyncpa %s15, 0
    %17 = vsyncpa [#allocation10], 0
    %18 = vsyncpa [#allocation5], 0
    %s19 = scalar_lea.sflag [#allocation5], 1
    %20 = vsyncpa %s19, 0
    loop: start=0, step=1, limit=4
    $region2: #{tpu_custom_call.1} parent=1 // loop_pre_header
      _
    $region3: #{tpu_custom_call.1} parent=1 // loop_header
      %s22 = sphi 0, %s26
      %p23 = scmp.ge.s32.totalorder %s22, 4
      %s32 = sphi 0, %s34
      %s35 = sphi 0, %s32
      %s36 = sphi 0, %s35
      %s52 = sphi 0, %s36
      %s58 = sphi 0, %s60
      %s61 = sphi 0, %s58
      %s62 = sphi 0, %s61
      %s78 = sphi 0, %s62
      %s84 = sphi 0, %s86
      %s87 = sphi 0, %s84
      %s88 = sphi 0, %s87
      %s104 = sphi 0, %s88
      %s108 = sphi 0, %s108
      %s110 = sphi 0, %s108
      %s111 = sphi 0, %s110
      %s125 = sphi 0, %s111
      %s129 = sphi 0, %s129
      %s131 = sphi 0, %s129
      %s132 = sphi 0, %s131
      %s146 = sphi 0, %s132
      %s150 = sphi 0, %s150
      %s152 = sphi 0, %s150
      %s153 = sphi 0, %s152
      %s167 = sphi 0, %s153
      %s173 = sphi 0, %s175
      %s176 = sphi 0, %s173
      %s177 = sphi 0, %s176
      %s193 = sphi 0, %s177
    $region4: #{tpu_custom_call.1} parent=1 // loop_header_branch
      %25 = sbr.rel (%p23) target = $region8
    $region5: #{tpu_custom_call.1} parent=1 // loop_body
      %s27 = ssub.s32 %s22, 1
      %s28 = ssub.s32 %s22, 2
      %s29 = sadd.s32 %s22, 1
      %s30 = ssub.s32 %s22, %s29
      %p31 = scmp.eq.s32.totalorder %s30, 0
      %s33 = sadd.s32 %s32, 1
      %s34 = scalar_select %p31, %s32, %s33
      %p37 = pneg %p31
      %p38 = scmp.eq.s32.totalorder %s22, 1
      %p39 = por %p37, %p38
      %p40 = scmp.ne.s32.totalorder %s32, %s35
      %p41 = scmp.eq.s32.totalorder %s22, 0
      %p42 = por %p40, %p41
      %p43 = scmp.ne.s32.totalorder %s32, %s35
      %p44 = scmp.eq.s32.totalorder %s27, 1
      %p45 = por %p43, %p44
      %p46 = scmp.ne.s32.totalorder %s35, %s36
      %p47 = scmp.eq.s32.totalorder %s27, 0
      %p48 = por %p46, %p47
      %p49 = scmp.ne.s32.totalorder %s35, %s36
      %p50 = scmp.eq.s32.totalorder %s28, 1
      %p51 = por %p49, %p50
      %p53 = scmp.ne.s32.totalorder %s36, %s52
      %p54 = scmp.eq.s32.totalorder %s28, 0
      %p55 = por %p53, %p54
      %s56 = ssub.s32 %s22, %s29
      %p57 = scmp.eq.s32.totalorder %s56, 0
      %s59 = sadd.s32 %s58, 1
      %s60 = scalar_select %p57, %s58, %s59
      %p63 = pneg %p57
      %p64 = scmp.eq.s32.totalorder %s22, 1
      %p65 = por %p63, %p64
      %p66 = scmp.ne.s32.totalorder %s58, %s61
      %p67 = scmp.eq.s32.totalorder %s22, 0
      %p68 = por %p66, %p67
      %p69 = scmp.ne.s32.totalorder %s58, %s61
      %p70 = scmp.eq.s32.totalorder %s27, 1
      %p71 = por %p69, %p70
      %p72 = scmp.ne.s32.totalorder %s61, %s62
      %p73 = scmp.eq.s32.totalorder %s27, 0
      %p74 = por %p72, %p73
      %p75 = scmp.ne.s32.totalorder %s61, %s62
      %p76 = scmp.eq.s32.totalorder %s28, 1
      %p77 = por %p75, %p76
      %p79 = scmp.ne.s32.totalorder %s62, %s78
      %p80 = scmp.eq.s32.totalorder %s28, 0
      %p81 = por %p79, %p80
      %s82 = ssub.s32 %s22, %s29
      %p83 = scmp.eq.s32.totalorder %s82, 0
      %s85 = sadd.s32 %s84, 1
      %s86 = scalar_select %p83, %s84, %s85
      %p89 = pneg %p83
      %p90 = scmp.eq.s32.totalorder %s22, 1
      %p91 = por %p89, %p90
      %p92 = scmp.ne.s32.totalorder %s84, %s87
      %p93 = scmp.eq.s32.totalorder %s22, 0
      %p94 = por %p92, %p93
      %p95 = scmp.ne.s32.totalorder %s84, %s87
      %p96 = scmp.eq.s32.totalorder %s27, 1
      %p97 = por %p95, %p96
      %p98 = scmp.ne.s32.totalorder %s87, %s88
      %p99 = scmp.eq.s32.totalorder %s27, 0
      %p100 = por %p98, %p99
      %p101 = scmp.ne.s32.totalorder %s87, %s88
      %p102 = scmp.eq.s32.totalorder %s28, 1
      %p103 = por %p101, %p102
      %p105 = scmp.ne.s32.totalorder %s88, %s104
      %p106 = scmp.eq.s32.totalorder %s28, 0
      %p107 = por %p105, %p106
      %s109 = sadd.s32 %s108, 1
      %p112 = scmp.eq.s32.totalorder %s22, 1
      %p113 = scmp.ne.s32.totalorder %s108, %s110
      %p114 = scmp.eq.s32.totalorder %s22, 0
      %p115 = por %p113, %p114
      %p116 = scmp.ne.s32.totalorder %s108, %s110
      %p117 = scmp.eq.s32.totalorder %s27, 1
      %p118 = por %p116, %p117
      %p119 = scmp.ne.s32.totalorder %s110, %s111
      %p120 = scmp.eq.s32.totalorder %s27, 0
      %p121 = por %p119, %p120
      %p122 = scmp.ne.s32.totalorder %s110, %s111
      %p123 = scmp.eq.s32.totalorder %s28, 1
      %p124 = por %p122, %p123
      %p126 = scmp.ne.s32.totalorder %s111, %s125
      %p127 = scmp.eq.s32.totalorder %s28, 0
      %p128 = por %p126, %p127
      %s130 = sadd.s32 %s129, 1
      %p133 = scmp.eq.s32.totalorder %s22, 1
      %p134 = scmp.ne.s32.totalorder %s129, %s131
      %p135 = scmp.eq.s32.totalorder %s22, 0
      %p136 = por %p134, %p135
      %p137 = scmp.ne.s32.totalorder %s129, %s131
      %p138 = scmp.eq.s32.totalorder %s27, 1
      %p139 = por %p137, %p138
      %p140 = scmp.ne.s32.totalorder %s131, %s132
      %p141 = scmp.eq.s32.totalorder %s27, 0
      %p142 = por %p140, %p141
      %p143 = scmp.ne.s32.totalorder %s131, %s132
      %p144 = scmp.eq.s32.totalorder %s28, 1
      %p145 = por %p143, %p144
      %p147 = scmp.ne.s32.totalorder %s132, %s146
      %p148 = scmp.eq.s32.totalorder %s28, 0
      %p149 = por %p147, %p148
      %s151 = sadd.s32 %s150, 1
      %p154 = scmp.eq.s32.totalorder %s22, 1
      %p155 = scmp.ne.s32.totalorder %s150, %s152
      %p156 = scmp.eq.s32.totalorder %s22, 0
      %p157 = por %p155, %p156
      %p158 = scmp.ne.s32.totalorder %s150, %s152
      %p159 = scmp.eq.s32.totalorder %s27, 1
      %p160 = por %p158, %p159
      %p161 = scmp.ne.s32.totalorder %s152, %s153
      %p162 = scmp.eq.s32.totalorder %s27, 0
      %p163 = por %p161, %p162
      %p164 = scmp.ne.s32.totalorder %s152, %s153
      %p165 = scmp.eq.s32.totalorder %s28, 1
      %p166 = por %p164, %p165
      %p168 = scmp.ne.s32.totalorder %s153, %s167
      %p169 = scmp.eq.s32.totalorder %s28, 0
      %p170 = por %p168, %p169
      %s171 = ssub.s32 %s22, %s29
      %p172 = scmp.eq.s32.totalorder %s171, 0
      %s174 = sadd.s32 %s173, 1
      %s175 = scalar_select %p172, %s173, %s174
      %p178 = pneg %p172
      %p179 = scmp.eq.s32.totalorder %s22, 1
      %p180 = por %p178, %p179
      %p181 = scmp.ne.s32.totalorder %s173, %s176
      %p182 = scmp.eq.s32.totalorder %s22, 0
      %p183 = por %p181, %p182
      %p184 = scmp.ne.s32.totalorder %s173, %s176
      %p185 = scmp.eq.s32.totalorder %s27, 1
      %p186 = por %p184, %p185
      %p187 = scmp.ne.s32.totalorder %s176, %s177
      %p188 = scmp.eq.s32.totalorder %s27, 0
      %p189 = por %p187, %p188
      %p190 = scmp.ne.s32.totalorder %s176, %s177
      %p191 = scmp.eq.s32.totalorder %s28, 1
      %p192 = por %p190, %p191
      %p194 = scmp.ne.s32.totalorder %s177, %s193
      %p195 = scmp.eq.s32.totalorder %s28, 0
      %p196 = por %p194, %p195
      %p197 = scmp.le.s32.totalorder 1, %s22
      %p198 = scmp.lt.s32.totalorder %s22, 3
      %p199 = pnand %p197, %p198
      %p200 = pneg %p199
      // Predicated region
      $region9: #{tpu_custom_call.1} parent=5 // pred_check
        _
      $region10: #{tpu_custom_call.1} parent=5 // pred_check_branch
        %202 = sbr.rel (%p199) target = $region12
      $region11: #{tpu_custom_call.1} parent=5 // pred_region
        %s203 = ssub.s32 %s22, 1
        // Predicated region
        $region13: #{tpu_custom_call.1} parent=11 // pred_check
          %p204 = pneg %p121
        $region14: #{tpu_custom_call.1} parent=11 // pred_check_branch
          %206 = sbr.rel (%p204) target = $region16
        $region15: #{tpu_custom_call.1} parent=11 // pred_region
          %208 = vsyncadd [#allocation10], 0
          %s209 = sshll.u32 %s3, 4
          %s210 = int_to_ptr.hbm [resolvable:$true] %s209
          %s211 = sshll.u32 [#allocation9], 4
          %s212 = int_to_ptr.vmem [resolvable:$true] %s211
          %217 = dma.hbm_to_vmem [thread:$0]  %s210, 512, %s212, [#allocation10], 128, 128, 8
        $region16: #{tpu_custom_call.1} parent=11 // pred_fallthru
          _
        // Predicated region
        $region17: #{tpu_custom_call.1} parent=11 // pred_check
          %p218 = pneg %p142
        $region18: #{tpu_custom_call.1} parent=11 // pred_check_branch
          %220 = sbr.rel (%p218) target = $region20
        $region19: #{tpu_custom_call.1} parent=11 // pred_region
          %222 = vsyncadd [#allocation10], 0
          %s223 = sshll.u32 %s4, 4
          %s224 = int_to_ptr.hbm [resolvable:$true] %s223
          %s225 = sshll.u32 [#allocation11], 4
          %s226 = int_to_ptr.vmem [resolvable:$true] %s225
          %231 = dma.hbm_to_vmem [thread:$0]  %s224, 512, %s226, [#allocation10], 128, 128, 8
        $region20: #{tpu_custom_call.1} parent=11 // pred_fallthru
          _
        // Predicated region
        $region21: #{tpu_custom_call.1} parent=11 // pred_check
          %p232 = pneg %p163
        $region22: #{tpu_custom_call.1} parent=11 // pred_check_branch
          %234 = sbr.rel (%p232) target = $region24
        $region23: #{tpu_custom_call.1} parent=11 // pred_region
          _
        $region24: #{tpu_custom_call.1} parent=11 // pred_fallthru
          _
      $region12: #{tpu_custom_call.1} parent=5 // pred_fallthru
        _
      %p235 = scmp.lt.s32.totalorder %s22, 2
      // Predicated region
      $region25: #{tpu_custom_call.1} parent=5 // pred_check
        %p236 = pneg %p235
      $region26: #{tpu_custom_call.1} parent=5 // pred_check_branch
        %238 = sbr.rel (%p236) target = $region28
      $region27: #{tpu_custom_call.1} parent=5 // pred_region
        // Predicated region
        $region29: #{tpu_custom_call.1} parent=27 // pred_check
          %p239 = pneg %p42
        $region30: #{tpu_custom_call.1} parent=27 // pred_check_branch
          %241 = sbr.rel (%p239) target = $region32
        $region31: #{tpu_custom_call.1} parent=27 // pred_region
          %s242 = sand.u32 %s32, 1
          %s243 = scalar_lea.sflag [#allocation4], %s242
          %s244 = sand.u32 %s32, 1
          %s245 = smul.addr %s244, 64
          %s246 = scalar_lea.vmem [#allocation3], %s245
          %248 = vsyncadd %s243, 0
          %s249 = smul.addr %s22, 8
          %s250 = scalar_lea.hbm %s0, %s249
          %s251 = sshll.u32 %s250, 4
          %s252 = int_to_ptr.hbm [resolvable:$true] %s251
          %s253 = sshll.u32 %s246, 4
          %s254 = int_to_ptr.vmem [resolvable:$true] %s253
          %259 = dma.hbm_to_vmem [thread:$0]  %s252, 1024, %s254, %s243, 256, 128, 8
        $region32: #{tpu_custom_call.1} parent=27 // pred_fallthru
          _
        // Predicated region
        $region33: #{tpu_custom_call.1} parent=27 // pred_check
          %p260 = pneg %p68
        $region34: #{tpu_custom_call.1} parent=27 // pred_check_branch
          %262 = sbr.rel (%p260) target = $region36
        $region35: #{tpu_custom_call.1} parent=27 // pred_region
          %s263 = sand.u32 %s22, 1
          %s264 = scalar_lea.sflag [#allocation7], %s263
          %s265 = sand.u32 %s58, 1
          %s266 = smul.addr %s265, 8
          %s267 = scalar_lea.vmem [#allocation6], %s266
          %269 = vsyncadd %s264, 0
          %s270 = smul.addr %s22, 8
          %s271 = scalar_lea.hbm %s1, %s270
          %s273 = sshll.u32 %s271, 4
          %s274 = int_to_ptr.hbm [resolvable:$true] %s273
          %s275 = sshll.u32 %s267, 4
          %s276 = int_to_ptr.vmem [resolvable:$true] %s275
          %278 = dma.hbm_to_vmem [thread:$0]  %s274, 128, %s276, %s264
        $region36: #{tpu_custom_call.1} parent=27 // pred_fallthru
          _
        // Predicated region
        $region37: #{tpu_custom_call.1} parent=27 // pred_check
          %p279 = pneg %p94
        $region38: #{tpu_custom_call.1} parent=27 // pred_check_branch
          %281 = sbr.rel (%p279) target = $region40
        $region39: #{tpu_custom_call.1} parent=27 // pred_region
          %s282 = sand.u32 %s22, 1
          %s283 = scalar_lea.sflag [#allocation7], %s282
          %s284 = sand.u32 %s84, 1
          %s285 = smul.addr %s284, 8
          %s286 = scalar_lea.vmem [#allocation8], %s285
          %288 = vsyncadd %s283, 0
          %s289 = smul.addr %s22, 8
          %s290 = scalar_lea.hbm %s2, %s289
          %s292 = sshll.u32 %s290, 4
          %s293 = int_to_ptr.hbm [resolvable:$true] %s292
          %s294 = sshll.u32 %s286, 4
          %s295 = int_to_ptr.vmem [resolvable:$true] %s294
          %297 = dma.hbm_to_vmem [thread:$0]  %s293, 128, %s295, %s283
        $region40: #{tpu_custom_call.1} parent=27 // pred_fallthru
          _
      $region28: #{tpu_custom_call.1} parent=5 // pred_fallthru
        _
      %p298 = scmp.le.s32.totalorder 1, %s22
      %p299 = scmp.lt.s32.totalorder %s22, 3
      %p300 = pnand %p298, %p299
      %p301 = pneg %p300
      // Predicated region
      $region41: #{tpu_custom_call.1} parent=5 // pred_check
        _
      $region42: #{tpu_custom_call.1} parent=5 // pred_check_branch
        %303 = sbr.rel (%p300) target = $region44
      $region43: #{tpu_custom_call.1} parent=5 // pred_region
        %s304 = ssub.s32 %s22, 1
        %s305 = sand.u32 %s35, 1
        %s306 = scalar_lea.sflag [#allocation4], %s305
        %s307 = sand.u32 %s35, 1
        %s308 = smul.addr %s307, 64
        %s309 = scalar_lea.vmem [#allocation3], %s308
        // Predicated region
        $region45: #{tpu_custom_call.1} parent=43 // pred_check
          %p310 = pneg %p48
        $region46: #{tpu_custom_call.1} parent=43 // pred_check_branch
          %312 = sbr.rel (%p310) target = $region48
        $region47: #{tpu_custom_call.1} parent=43 // pred_region
          %314 = dma.done %s306, 1024
        $region48: #{tpu_custom_call.1} parent=43 // pred_fallthru
          _
        %s315 = sand.u32 %s27, 1
        %s316 = scalar_lea.sflag [#allocation7], %s315
        %s317 = sand.u32 %s61, 1
        %s318 = smul.addr %s317, 8
        %s319 = scalar_lea.vmem [#allocation6], %s318
        // Predicated region
        $region49: #{tpu_custom_call.1} parent=43 // pred_check
          %p320 = pneg %p74
        $region50: #{tpu_custom_call.1} parent=43 // pred_check_branch
          %322 = sbr.rel (%p320) target = $region52
        $region51: #{tpu_custom_call.1} parent=43 // pred_region
          %324 = dma.done %s316, 128
        $region52: #{tpu_custom_call.1} parent=43 // pred_fallthru
          _
        %s325 = sand.u32 %s27, 1
        %s326 = scalar_lea.sflag [#allocation7], %s325
        %s327 = sand.u32 %s87, 1
        %s328 = smul.addr %s327, 8
        %s329 = scalar_lea.vmem [#allocation8], %s328
        // Predicated region
        $region53: #{tpu_custom_call.1} parent=43 // pred_check
          %p330 = pneg %p100
        $region54: #{tpu_custom_call.1} parent=43 // pred_check_branch
          %332 = sbr.rel (%p330) target = $region56
        $region55: #{tpu_custom_call.1} parent=43 // pred_region
          %334 = dma.done %s326, 128
        $region56: #{tpu_custom_call.1} parent=43 // pred_fallthru
          _
        // Predicated region
        $region57: #{tpu_custom_call.1} parent=43 // pred_check
          %p335 = pneg %p121
        $region58: #{tpu_custom_call.1} parent=43 // pred_check_branch
          %337 = sbr.rel (%p335) target = $region60
        $region59: #{tpu_custom_call.1} parent=43 // pred_region
          %339 = dma.done [#allocation10], 512
        $region60: #{tpu_custom_call.1} parent=43 // pred_fallthru
          _
        // Predicated region
        $region61: #{tpu_custom_call.1} parent=43 // pred_check
          %p340 = pneg %p142
        $region62: #{tpu_custom_call.1} parent=43 // pred_check_branch
          %342 = sbr.rel (%p340) target = $region64
        $region63: #{tpu_custom_call.1} parent=43 // pred_region
          %344 = dma.done [#allocation10], 512
        $region64: #{tpu_custom_call.1} parent=43 // pred_fallthru
          _
        %s345 = sand.u32 %s35, 1
        %s346 = scalar_lea.sflag [#allocation4], %s345
        %s347 = sand.u32 %s35, 1
        %s348 = smul.addr %s347, 64
        %s349 = scalar_lea.vmem [#allocation3], %s348
        %p350 = pneg %p48
        %p351 = pneg %p45
        %s352 = sand.u32 %s27, 1
        %s353 = scalar_lea.sflag [#allocation7], %s352
        %s354 = sand.u32 %s61, 1
        %s355 = smul.addr %s354, 8
        %s356 = scalar_lea.vmem [#allocation6], %s355
        %p357 = pneg %p74
        %p358 = pneg %p71
        %s359 = sand.u32 %s27, 1
        %s360 = scalar_lea.sflag [#allocation7], %s359
        %s361 = sand.u32 %s87, 1
        %s362 = smul.addr %s361, 8
        %s363 = scalar_lea.vmem [#allocation8], %s362
        %p364 = pneg %p100
        %p365 = pneg %p97
        %p366 = pneg %p121
        %p367 = pneg %p118
        %p368 = pneg %p142
        %p369 = pneg %p139
        %p370 = pneg %p163
        %p371 = pneg %p160
        %p372 = pneg %p189
        %p373 = pneg %p186
        %s374 = sand.u32 %s176, 1
        %s375 = scalar_lea.sflag [#allocation5], %s374
        %s376 = sand.u32 %s176, 1
        %s377 = smul.addr %s376, 64
        %s378 = scalar_lea.vmem [#allocation12], %s377
        %v380 = vld [vmem:[%s309] sm:$0xff]
        %v381 = vld [vmem:[%s309 + $0x8] sm:$0xff]
        %v382 = vld [vmem:[%s309 + $0x10] sm:$0xff]
        %v383 = vld [vmem:[%s309 + $0x18] sm:$0xff]
        %v384 = vld [vmem:[%s309 + $0x20] sm:$0xff]
        %v385 = vld [vmem:[%s309 + $0x28] sm:$0xff]
        %v386 = vld [vmem:[%s309 + $0x30] sm:$0xff]
        %v387 = vld [vmem:[%s309 + $0x38] sm:$0xff]
        %v388 = vld [vmem:[#allocation9] sm:$0xff]
        %v389 = vld [vmem:[#allocation9 + $0x8] sm:$0xff]
        %v390 = vld [vmem:[#allocation9 + $0x10] sm:$0xff]
        %v391 = vld [vmem:[#allocation9 + $0x18] sm:$0xff]
        %v392 = vld [vmem:[%s5] sm:$0x1]
        %v394 = vperm.slane %v392, 0
        %vm396 = vcmask 261120
        %v398 = vsel %vm396, %v380, 0
        %v401 = vsel %vm396, %v381, 0
        %v404 = vsel %vm396, %v382, 0
        %v407 = vsel %vm396, %v383, 0
        %v410 = vsel %vm396, %v384, 0
        %v413 = vsel %vm396, %v385, 0
        %v416 = vsel %vm396, %v386, 0
        %v419 = vsel %vm396, %v387, 0
        %421 = vmatpush.msra.mxu0 0.0
        %422 = vmatpush.msra.mxu0 0.0
        %423 = vmatpush.msra.mxu0 0.0
        %424 = vmatpush.msra.mxu0 0.0
        %425 = vmatpush.msra.mxu0 0.0
        %426 = vmatpush.msra.mxu0 0.0
        %427 = vmatpush.msra.mxu0 0.0
        %428 = vmatpush.msra.mxu0 0.0
        %429 = vmatpush.msra.mxu0 0.0
        %430 = vmatpush.msra.mxu0 0.0
        %431 = vmatpush.msra.mxu0 0.0
        %432 = vmatpush.msra.mxu0 0.0
        %433 = vmatpush.msra.mxu0 %v391
        %434 = vmatpush.msra.mxu0 %v390
        %435 = vmatpush.msra.mxu0 %v389
        %436 = vmatpush.msra.mxu0 %v388
        %437 = vmatmul.f32.gmra.mxu0 %v398
        %v438 = vpop.f32.mrf.mxu0
        %v439 = vadd.f32 %v394, %v438
        %440 = vmatmul.f32.gmra.mxu0 %v401
        %v441 = vpop.f32.mrf.mxu0
        %v442 = vadd.f32 %v394, %v441
        %443 = vmatmul.f32.gmra.mxu0 %v404
        %v444 = vpop.f32.mrf.mxu0
        %v445 = vadd.f32 %v394, %v444
        %446 = vmatmul.f32.gmra.mxu0 %v407
        %v447 = vpop.f32.mrf.mxu0
        %v448 = vadd.f32 %v394, %v447
        %449 = vmatmul.f32.gmra.mxu0 %v410
        %v450 = vpop.f32.mrf.mxu0
        %v451 = vadd.f32 %v394, %v450
        %452 = vmatmul.f32.gmra.mxu0 %v413
        %v453 = vpop.f32.mrf.mxu0
        %v454 = vadd.f32 %v394, %v453
        %455 = vmatmul.f32.gmra.mxu0 %v416
        %v456 = vpop.f32.mrf.mxu0
        %v457 = vadd.f32 %v394, %v456
        %458 = vmatmul.f32.gmra.mxu0 %v419
        %v459 = vpop.f32.mrf.mxu0
        %v460 = vadd.f32 %v394, %v459
        %461 = vdwg.mxu0
        %462 = vst [vmem:[#allocation2] sm:$0xff] %v439
        %463 = vst [vmem:[#allocation2 + $0x8] sm:$0xff] %v442
        %464 = vst [vmem:[#allocation2 + $0x10] sm:$0xff] %v445
        %465 = vst [vmem:[#allocation2 + $0x18] sm:$0xff] %v448
        %466 = vst [vmem:[#allocation2 + $0x20] sm:$0xff] %v451
        %467 = vst [vmem:[#allocation2 + $0x28] sm:$0xff] %v454
        %468 = vst [vmem:[#allocation2 + $0x30] sm:$0xff] %v457
        %469 = vst [vmem:[#allocation2 + $0x38] sm:$0xff] %v460
        %v470 = vld [vmem:[#allocation11] sm:$0xff]
        %v471 = vld [vmem:[#allocation11 + $0x8] sm:$0xff]
        %v472 = vld [vmem:[#allocation11 + $0x10] sm:$0xff]
        %v473 = vld [vmem:[#allocation11 + $0x18] sm:$0xff]
        %v474 = vpack.c.bf16 %v471, %v470
        %v475 = vpack.c.bf16 %v473, %v472
        %v476 = vld [vmem:[%s319] sm:$0xff]
        %v477 = vld [vmem:[%s329] sm:$0xff]
        %v478 = vld [vmem:[#allocation2] sm:$0xff]
        %v479 = vpack.c.bf16 %v476, %v476
        %v481 = vsel %vm396, %v479, 0
        %483 = vmatpush.bf16.msra.mxu0 0
        %484 = vmatpush.bf16.msra.mxu0 0
        %485 = vmatpush.bf16.msra.mxu0 0
        %486 = vmatpush.bf16.msra.mxu0 0
        %487 = vmatpush.bf16.msra.mxu0 0
        %488 = vmatpush.bf16.msra.mxu0 0
        %489 = vmatpush.bf16.msra.mxu0 %v475
        %490 = vmatpush.bf16.msra.mxu0 %v474
        %491 = vmatmul.bf16.gmra.mxu0 %v481
        %v492 = vpop.f32.mrf.mxu0
        %v493 = vadd.f32 0.0, %v492
        %v494 = vpop.f32.mrf.mxu0
        %495 = vdwg.mxu0
        %v496 = vadd.f32 %v478, %v493
        %v497 = vxor.u32 %v496, 2147483648
        %v498 = vmul.f32 %v497, 1.442695
        %v499 = vpow.pop %v498
        %v500 = vadd.f32 %v499, 1.0
        %v501 = vrcp.pop %v500
        %v502 = vmul.f32 %v500, %v501
        %v503 = vsub.f32 1.0, %v502
        %v504 = vmul.f32 %v501, %v503
        %v505 = vadd.f32 %v501, %v504
        %vm506 = vweird.f32 %v500
        %vm507 = vweird.f32 %v501
        %vm508 = vmor %vm506, %vm507
        %v509 = vsel %vm508, %v501, %v505
        %v510 = vand.u32 2147483647, %v500
        %vm511 = vcmp.eq.f32.partialorder %v510, 8.507059e+37
        %v512 = vand.u32 %v500, 2147483648
        %v513 = vor.u32 1.1754944e-38, %v512
        %v514 = vsel %vm511, %v513, %v509
        %v515 = vmul.f32 1.0, %v514
        %v516 = vmul.f32 %v515, 2.0
        %v517 = vsub.f32 %v516, 1.0
        %519 = vrot.lane.b32.xlu0 %v517, 64
        %v520 = vpop.permute.xlu0 %519
        %v522 = vmul.f32 %v515, %v520
        %v523 = vmul.f32 %v477, %v515
        %525 = vrot.lane.b32.xlu0 %v523, 32
        %v526 = vpop.permute.xlu0 %525
        %v528 = vadd.f32 %v522, %v526
        %v529 = vtanh.pop %v528
        %531 = vrot.lane.b32.xlu0 %v529, 32
        %v532 = vpop.permute.xlu0 %531
        %v534 = vmul.f32 %v515, %v532
        %536 = vrot.lane.b32.xlu0 %v534, 64
        %v537 = vpop.permute.xlu0 %536
        %v539 = vsel %vm396, %v537, %v528
        %vm540 = vcmask 523264
        %541 = vst.msk [vmem:[%s378] sm:$0xff] %vm540, %v539
        %s542 = scalar_lea.vmem [#allocation2], 8
        %v543 = vld [vmem:[%s542] sm:$0xff]
        %v544 = vpack.c.bf16 %v534, %v534
        %546 = vrot.lane.b32.xlu0 %v544, 64
        %v547 = vpop.permute.xlu0 %546
        %v549 = vsel %vm396, %v547, 0
        %551 = vmatpush.bf16.msra.mxu0 0
        %552 = vmatpush.bf16.msra.mxu0 0
        %553 = vmatpush.bf16.msra.mxu0 0
        %554 = vmatpush.bf16.msra.mxu0 0
        %555 = vmatpush.bf16.msra.mxu0 0
        %556 = vmatpush.bf16.msra.mxu0 0
        %557 = vmatpush.bf16.msra.mxu0 %v475
        %558 = vmatpush.bf16.msra.mxu0 %v474
        %559 = vmatmul.bf16.gmra.mxu0 %v549
        %v560 = vpop.f32.mrf.mxu0
        %v561 = vadd.f32 0.0, %v560
        %v562 = vpop.f32.mrf.mxu0
        %563 = vdwg.mxu0
        %v564 = vadd.f32 %v543, %v561
        %v565 = vxor.u32 %v564, 2147483648
        %v566 = vmul.f32 %v565, 1.442695
        %v567 = vpow.pop %v566
        %v568 = vadd.f32 %v567, 1.0
        %v569 = vrcp.pop %v568
        %v570 = vmul.f32 %v568, %v569
        %v571 = vsub.f32 1.0, %v570
        %v572 = vmul.f32 %v569, %v571
        %v573 = vadd.f32 %v569, %v572
        %vm574 = vweird.f32 %v568
        %vm575 = vweird.f32 %v569
        %vm576 = vmor %vm574, %vm575
        %v577 = vsel %vm576, %v569, %v573
        %v578 = vand.u32 2147483647, %v568
        %vm579 = vcmp.eq.f32.partialorder %v578, 8.507059e+37
        %v580 = vand.u32 %v568, 2147483648
        %v581 = vor.u32 1.1754944e-38, %v580
        %v582 = vsel %vm579, %v581, %v577
        %v583 = vmul.f32 1.0, %v582
        %v584 = vmul.f32 %v583, 2.0
        %v585 = vsub.f32 %v584, 1.0
        %587 = vrot.lane.b32.xlu0 %v585, 64
        %v588 = vpop.permute.xlu0 %587
        %v590 = vmul.f32 %v583, %v588
        %592 = vrot.lane.b32.xlu0 %v583, 32
        %v593 = vpop.permute.xlu0 %592
        %v595 = vmul.f32 %v528, %v593
        %v596 = vadd.f32 %v590, %v595
        %v597 = vtanh.pop %v596
        %599 = vrot.lane.b32.xlu0 %v597, 32
        %v600 = vpop.permute.xlu0 %599
        %v602 = vmul.f32 %v583, %v600
        %604 = vrot.lane.b32.xlu0 %v602, 64
        %v605 = vpop.permute.xlu0 %604
        %v607 = vsel %vm396, %v605, %v596
        %s608 = scalar_lea.vmem %s378, 8 [#allocation12]
        %609 = vst.msk [vmem:[%s608] sm:$0xff] %vm540, %v607
        %s610 = scalar_lea.vmem [#allocation2], 16
        %v611 = vld [vmem:[%s610] sm:$0xff]
        %v612 = vpack.c.bf16 %v602, %v602
        %614 = vrot.lane.b32.xlu0 %v612, 64
        %v615 = vpop.permute.xlu0 %614
        %v617 = vsel %vm396, %v615, 0
        %619 = vmatpush.bf16.msra.mxu0 0
        %620 = vmatpush.bf16.msra.mxu0 0
        %621 = vmatpush.bf16.msra.mxu0 0
        %622 = vmatpush.bf16.msra.mxu0 0
        %623 = vmatpush.bf16.msra.mxu0 0
        %624 = vmatpush.bf16.msra.mxu0 0
        %625 = vmatpush.bf16.msra.mxu0 %v475
        %626 = vmatpush.bf16.msra.mxu0 %v474
        %627 = vmatmul.bf16.gmra.mxu0 %v617
        %v628 = vpop.f32.mrf.mxu0
        %v629 = vadd.f32 0.0, %v628
        %v630 = vpop.f32.mrf.mxu0
        %631 = vdwg.mxu0
        %v632 = vadd.f32 %v611, %v629
        %v633 = vxor.u32 %v632, 2147483648
        %v634 = vmul.f32 %v633, 1.442695
        %v635 = vpow.pop %v634
        %v636 = vadd.f32 %v635, 1.0
        %v637 = vrcp.pop %v636
        %v638 = vmul.f32 %v636, %v637
        %v639 = vsub.f32 1.0, %v638
        %v640 = vmul.f32 %v637, %v639
        %v641 = vadd.f32 %v637, %v640
        %vm642 = vweird.f32 %v636
        %vm643 = vweird.f32 %v637
        %vm644 = vmor %vm642, %vm643
        %v645 = vsel %vm644, %v637, %v641
        %v646 = vand.u32 2147483647, %v636
        %vm647 = vcmp.eq.f32.partialorder %v646, 8.507059e+37
        %v648 = vand.u32 %v636, 2147483648
        %v649 = vor.u32 1.1754944e-38, %v648
        %v650 = vsel %vm647, %v649, %v645
        %v651 = vmul.f32 1.0, %v650
        %v652 = vmul.f32 %v651, 2.0
        %v653 = vsub.f32 %v652, 1.0
        %655 = vrot.lane.b32.xlu0 %v653, 64
        %v656 = vpop.permute.xlu0 %655
        %v658 = vmul.f32 %v651, %v656
        %660 = vrot.lane.b32.xlu0 %v651, 32
        %v661 = vpop.permute.xlu0 %660
        %v663 = vmul.f32 %v596, %v661
        %v664 = vadd.f32 %v658, %v663
        %v665 = vtanh.pop %v664
        %667 = vrot.lane.b32.xlu0 %v665, 32
        %v668 = vpop.permute.xlu0 %667
        %v670 = vmul.f32 %v651, %v668
        %672 = vrot.lane.b32.xlu0 %v670, 64
        %v673 = vpop.permute.xlu0 %672
        %v675 = vsel %vm396, %v673, %v664
        %s676 = scalar_lea.vmem %s378, 16 [#allocation12]
        %677 = vst.msk [vmem:[%s676] sm:$0xff] %vm540, %v675
        %s678 = scalar_lea.vmem [#allocation2], 24
        %v679 = vld [vmem:[%s678] sm:$0xff]
        %v680 = vpack.c.bf16 %v670, %v670
        %682 = vrot.lane.b32.xlu0 %v680, 64
        %v683 = vpop.permute.xlu0 %682
        %v685 = vsel %vm396, %v683, 0
        %687 = vmatpush.bf16.msra.mxu0 0
        %688 = vmatpush.bf16.msra.mxu0 0
        %689 = vmatpush.bf16.msra.mxu0 0
        %690 = vmatpush.bf16.msra.mxu0 0
        %691 = vmatpush.bf16.msra.mxu0 0
        %692 = vmatpush.bf16.msra.mxu0 0
        %693 = vmatpush.bf16.msra.mxu0 %v475
        %694 = vmatpush.bf16.msra.mxu0 %v474
        %695 = vmatmul.bf16.gmra.mxu0 %v685
        %v696 = vpop.f32.mrf.mxu0
        %v697 = vadd.f32 0.0, %v696
        %v698 = vpop.f32.mrf.mxu0
        %699 = vdwg.mxu0
        %v700 = vadd.f32 %v679, %v697
        %v701 = vxor.u32 %v700, 2147483648
        %v702 = vmul.f32 %v701, 1.442695
        %v703 = vpow.pop %v702
        %v704 = vadd.f32 %v703, 1.0
        %v705 = vrcp.pop %v704
        %v706 = vmul.f32 %v704, %v705
        %v707 = vsub.f32 1.0, %v706
        %v708 = vmul.f32 %v705, %v707
        %v709 = vadd.f32 %v705, %v708
        %vm710 = vweird.f32 %v704
        %vm711 = vweird.f32 %v705
        %vm712 = vmor %vm710, %vm711
        %v713 = vsel %vm712, %v705, %v709
        %v714 = vand.u32 2147483647, %v704
        %vm715 = vcmp.eq.f32.partialorder %v714, 8.507059e+37
        %v716 = vand.u32 %v704, 2147483648
        %v717 = vor.u32 1.1754944e-38, %v716
        %v718 = vsel %vm715, %v717, %v713
        %v719 = vmul.f32 1.0, %v718
        %v720 = vmul.f32 %v719, 2.0
        %v721 = vsub.f32 %v720, 1.0
        %723 = vrot.lane.b32.xlu0 %v721, 64
        %v724 = vpop.permute.xlu0 %723
        %v726 = vmul.f32 %v719, %v724
        %728 = vrot.lane.b32.xlu0 %v719, 32
        %v729 = vpop.permute.xlu0 %728
        %v731 = vmul.f32 %v664, %v729
        %v732 = vadd.f32 %v726, %v731
        %v733 = vtanh.pop %v732
        %735 = vrot.lane.b32.xlu0 %v733, 32
        %v736 = vpop.permute.xlu0 %735
        %v738 = vmul.f32 %v719, %v736
        %740 = vrot.lane.b32.xlu0 %v738, 64
        %v741 = vpop.permute.xlu0 %740
        %v743 = vsel %vm396, %v741, %v732
        %s744 = scalar_lea.vmem %s378, 24 [#allocation12]
        %745 = vst.msk [vmem:[%s744] sm:$0xff] %vm540, %v743
        %s746 = scalar_lea.vmem [#allocation2], 32
        %v747 = vld [vmem:[%s746] sm:$0xff]
        %v748 = vpack.c.bf16 %v738, %v738
        %750 = vrot.lane.b32.xlu0 %v748, 64
        %v751 = vpop.permute.xlu0 %750
        %v753 = vsel %vm396, %v751, 0
        %755 = vmatpush.bf16.msra.mxu0 0
        %756 = vmatpush.bf16.msra.mxu0 0
        %757 = vmatpush.bf16.msra.mxu0 0
        %758 = vmatpush.bf16.msra.mxu0 0
        %759 = vmatpush.bf16.msra.mxu0 0
        %760 = vmatpush.bf16.msra.mxu0 0
        %761 = vmatpush.bf16.msra.mxu0 %v475
        %762 = vmatpush.bf16.msra.mxu0 %v474
        %763 = vmatmul.bf16.gmra.mxu0 %v753
        %v764 = vpop.f32.mrf.mxu0
        %v765 = vadd.f32 0.0, %v764
        %v766 = vpop.f32.mrf.mxu0
        %767 = vdwg.mxu0
        %v768 = vadd.f32 %v747, %v765
        %v769 = vxor.u32 %v768, 2147483648
        %v770 = vmul.f32 %v769, 1.442695
        %v771 = vpow.pop %v770
        %v772 = vadd.f32 %v771, 1.0
        %v773 = vrcp.pop %v772
        %v774 = vmul.f32 %v772, %v773
        %v775 = vsub.f32 1.0, %v774
        %v776 = vmul.f32 %v773, %v775
        %v777 = vadd.f32 %v773, %v776
        %vm778 = vweird.f32 %v772
        %vm779 = vweird.f32 %v773
        %vm780 = vmor %vm778, %vm779
        %v781 = vsel %vm780, %v773, %v777
        %v782 = vand.u32 2147483647, %v772
        %vm783 = vcmp.eq.f32.partialorder %v782, 8.507059e+37
        %v784 = vand.u32 %v772, 2147483648
        %v785 = vor.u32 1.1754944e-38, %v784
        %v786 = vsel %vm783, %v785, %v781
        %v787 = vmul.f32 1.0, %v786
        %v788 = vmul.f32 %v787, 2.0
        %v789 = vsub.f32 %v788, 1.0
        %791 = vrot.lane.b32.xlu0 %v789, 64
        %v792 = vpop.permute.xlu0 %791
        %v794 = vmul.f32 %v787, %v792
        %796 = vrot.lane.b32.xlu0 %v787, 32
        %v797 = vpop.permute.xlu0 %796
        %v799 = vmul.f32 %v732, %v797
        %v800 = vadd.f32 %v794, %v799
        %v801 = vtanh.pop %v800
        %803 = vrot.lane.b32.xlu0 %v801, 32
        %v804 = vpop.permute.xlu0 %803
        %v806 = vmul.f32 %v787, %v804
        %808 = vrot.lane.b32.xlu0 %v806, 64
        %v809 = vpop.permute.xlu0 %808
        %v811 = vsel %vm396, %v809, %v800
        %s812 = scalar_lea.vmem %s378, 32 [#allocation12]
        %813 = vst.msk [vmem:[%s812] sm:$0xff] %vm540, %v811
        %s814 = scalar_lea.vmem [#allocation2], 40
        %v815 = vld [vmem:[%s814] sm:$0xff]
        %v816 = vpack.c.bf16 %v806, %v806
        %818 = vrot.lane.b32.xlu0 %v816, 64
        %v819 = vpop.permute.xlu0 %818
        %v821 = vsel %vm396, %v819, 0
        %823 = vmatpush.bf16.msra.mxu0 0
        %824 = vmatpush.bf16.msra.mxu0 0
        %825 = vmatpush.bf16.msra.mxu0 0
        %826 = vmatpush.bf16.msra.mxu0 0
        %827 = vmatpush.bf16.msra.mxu0 0
        %828 = vmatpush.bf16.msra.mxu0 0
        %829 = vmatpush.bf16.msra.mxu0 %v475
        %830 = vmatpush.bf16.msra.mxu0 %v474
        %831 = vmatmul.bf16.gmra.mxu0 %v821
        %v832 = vpop.f32.mrf.mxu0
        %v833 = vadd.f32 0.0, %v832
        %v834 = vpop.f32.mrf.mxu0
        %835 = vdwg.mxu0
        %v836 = vadd.f32 %v815, %v833
        %v837 = vxor.u32 %v836, 2147483648
        %v838 = vmul.f32 %v837, 1.442695
        %v839 = vpow.pop %v838
        %v840 = vadd.f32 %v839, 1.0
        %v841 = vrcp.pop %v840
        %v842 = vmul.f32 %v840, %v841
        %v843 = vsub.f32 1.0, %v842
        %v844 = vmul.f32 %v841, %v843
        %v845 = vadd.f32 %v841, %v844
        %vm846 = vweird.f32 %v840
        %vm847 = vweird.f32 %v841
        %vm848 = vmor %vm846, %vm847
        %v849 = vsel %vm848, %v841, %v845
        %v850 = vand.u32 2147483647, %v840
        %vm851 = vcmp.eq.f32.partialorder %v850, 8.507059e+37
        %v852 = vand.u32 %v840, 2147483648
        %v853 = vor.u32 1.1754944e-38, %v852
        %v854 = vsel %vm851, %v853, %v849
        %v855 = vmul.f32 1.0, %v854
        %v856 = vmul.f32 %v855, 2.0
        %v857 = vsub.f32 %v856, 1.0
        %859 = vrot.lane.b32.xlu0 %v857, 64
        %v860 = vpop.permute.xlu0 %859
        %v862 = vmul.f32 %v855, %v860
        %864 = vrot.lane.b32.xlu0 %v855, 32
        %v865 = vpop.permute.xlu0 %864
        %v867 = vmul.f32 %v800, %v865
        %v868 = vadd.f32 %v862, %v867
        %v869 = vtanh.pop %v868
        %871 = vrot.lane.b32.xlu0 %v869, 32
        %v872 = vpop.permute.xlu0 %871
        %v874 = vmul.f32 %v855, %v872
        %876 = vrot.lane.b32.xlu0 %v874, 64
        %v877 = vpop.permute.xlu0 %876
        %v879 = vsel %vm396, %v877, %v868
        %s880 = scalar_lea.vmem %s378, 40 [#allocation12]
        %881 = vst.msk [vmem:[%s880] sm:$0xff] %vm540, %v879
        %s882 = scalar_lea.vmem [#allocation2], 48
        %v883 = vld [vmem:[%s882] sm:$0xff]
        %v884 = vpack.c.bf16 %v874, %v874
        %886 = vrot.lane.b32.xlu0 %v884, 64
        %v887 = vpop.permute.xlu0 %886
        %v889 = vsel %vm396, %v887, 0
        %891 = vmatpush.bf16.msra.mxu0 0
        %892 = vmatpush.bf16.msra.mxu0 0
        %893 = vmatpush.bf16.msra.mxu0 0
        %894 = vmatpush.bf16.msra.mxu0 0
        %895 = vmatpush.bf16.msra.mxu0 0
        %896 = vmatpush.bf16.msra.mxu0 0
        %897 = vmatpush.bf16.msra.mxu0 %v475
        %898 = vmatpush.bf16.msra.mxu0 %v474
        %899 = vmatmul.bf16.gmra.mxu0 %v889
        %v900 = vpop.f32.mrf.mxu0
        %v901 = vadd.f32 0.0, %v900
        %v902 = vpop.f32.mrf.mxu0
        %903 = vdwg.mxu0
        %v904 = vadd.f32 %v883, %v901
        %v905 = vxor.u32 %v904, 2147483648
        %v906 = vmul.f32 %v905, 1.442695
        %v907 = vpow.pop %v906
        %v908 = vadd.f32 %v907, 1.0
        %v909 = vrcp.pop %v908
        %v910 = vmul.f32 %v908, %v909
        %v911 = vsub.f32 1.0, %v910
        %v912 = vmul.f32 %v909, %v911
        %v913 = vadd.f32 %v909, %v912
        %vm914 = vweird.f32 %v908
        %vm915 = vweird.f32 %v909
        %vm916 = vmor %vm914, %vm915
        %v917 = vsel %vm916, %v909, %v913
        %v918 = vand.u32 2147483647, %v908
        %vm919 = vcmp.eq.f32.partialorder %v918, 8.507059e+37
        %v920 = vand.u32 %v908, 2147483648
        %v921 = vor.u32 1.1754944e-38, %v920
        %v922 = vsel %vm919, %v921, %v917
        %v923 = vmul.f32 1.0, %v922
        %v924 = vmul.f32 %v923, 2.0
        %v925 = vsub.f32 %v924, 1.0
        %927 = vrot.lane.b32.xlu0 %v925, 64
        %v928 = vpop.permute.xlu0 %927
        %v930 = vmul.f32 %v923, %v928
        %932 = vrot.lane.b32.xlu0 %v923, 32
        %v933 = vpop.permute.xlu0 %932
        %v935 = vmul.f32 %v868, %v933
        %v936 = vadd.f32 %v930, %v935
        %v937 = vtanh.pop %v936
        %939 = vrot.lane.b32.xlu0 %v937, 32
        %v940 = vpop.permute.xlu0 %939
        %v942 = vmul.f32 %v923, %v940
        %944 = vrot.lane.b32.xlu0 %v942, 64
        %v945 = vpop.permute.xlu0 %944
        %v947 = vsel %vm396, %v945, %v936
        %s948 = scalar_lea.vmem %s378, 48 [#allocation12]
        %949 = vst.msk [vmem:[%s948] sm:$0xff] %vm540, %v947
        %s950 = scalar_lea.vmem [#allocation2], 56
        %v951 = vld [vmem:[%s950] sm:$0xff]
        %v952 = vpack.c.bf16 %v942, %v942
        %954 = vrot.lane.b32.xlu0 %v952, 64
        %v955 = vpop.permute.xlu0 %954
        %v957 = vsel %vm396, %v955, 0
        %959 = vmatpush.bf16.msra.mxu0 0
        %960 = vmatpush.bf16.msra.mxu0 0
        %961 = vmatpush.bf16.msra.mxu0 0
        %962 = vmatpush.bf16.msra.mxu0 0
        %963 = vmatpush.bf16.msra.mxu0 0
        %964 = vmatpush.bf16.msra.mxu0 0
        %965 = vmatpush.bf16.msra.mxu0 %v475
        %966 = vmatpush.bf16.msra.mxu0 %v474
        %967 = vmatmul.bf16.gmra.mxu0 %v957
        %v968 = vpop.f32.mrf.mxu0
        %v969 = vadd.f32 0.0, %v968
        %v970 = vpop.f32.mrf.mxu0
        %971 = vdwg.mxu0
        %v972 = vadd.f32 %v951, %v969
        %v973 = vxor.u32 %v972, 2147483648
        %v974 = vmul.f32 %v973, 1.442695
        %v975 = vpow.pop %v974
        %v976 = vadd.f32 %v975, 1.0
        %v977 = vrcp.pop %v976
        %v978 = vmul.f32 %v976, %v977
        %v979 = vsub.f32 1.0, %v978
        %v980 = vmul.f32 %v977, %v979
        %v981 = vadd.f32 %v977, %v980
        %vm982 = vweird.f32 %v976
        %vm983 = vweird.f32 %v977
        %vm984 = vmor %vm982, %vm983
        %v985 = vsel %vm984, %v977, %v981
        %v986 = vand.u32 2147483647, %v976
        %vm987 = vcmp.eq.f32.partialorder %v986, 8.507059e+37
        %v988 = vand.u32 %v976, 2147483648
        %v989 = vor.u32 1.1754944e-38, %v988
        %v990 = vsel %vm987, %v989, %v985
        %v991 = vmul.f32 1.0, %v990
        %v992 = vmul.f32 %v991, 2.0
        %v993 = vsub.f32 %v992, 1.0
        %995 = vrot.lane.b32.xlu0 %v993, 64
        %v996 = vpop.permute.xlu0 %995
        %v998 = vmul.f32 %v991, %v996
        %1000 = vrot.lane.b32.xlu0 %v991, 32
        %v1001 = vpop.permute.xlu0 %1000
        %v1003 = vmul.f32 %v936, %v1001
        %v1004 = vadd.f32 %v998, %v1003
        %v1005 = vtanh.pop %v1004
        %1007 = vrot.lane.b32.xlu0 %v1005, 32
        %v1008 = vpop.permute.xlu0 %1007
        %v1010 = vmul.f32 %v991, %v1008
        %1012 = vrot.lane.b32.xlu0 %v1010, 64
        %v1013 = vpop.permute.xlu0 %1012
        %v1015 = vsel %vm396, %v1013, %v1004
        %s1016 = scalar_lea.vmem %s378, 56 [#allocation12]
        %1017 = vst.msk [vmem:[%s1016] sm:$0xff] %vm540, %v1015
        %s1018 = sand.u32 %s176, 1
        %s1019 = scalar_lea.sflag [#allocation5], %s1018
        %s1020 = sand.u32 %s176, 1
        %s1021 = smul.addr %s1020, 64
        %s1022 = scalar_lea.vmem [#allocation12], %s1021
        // Predicated region
        $region65: #{tpu_custom_call.1} parent=43 // pred_check
          %p1023 = pneg %p186
        $region66: #{tpu_custom_call.1} parent=43 // pred_check_branch
          %1025 = sbr.rel (%p1023) target = $region68
        $region67: #{tpu_custom_call.1} parent=43 // pred_region
          %1027 = vsyncadd %s1019, 0
          %s1028 = smul.addr %s27, 8
          %s1029 = scalar_lea.hbm %s6, %s1028
          %s1030 = sshll.u32 %s1022, 4
          %s1031 = int_to_ptr.vmem [resolvable:$true] %s1030
          %s1032 = sshll.u32 %s1029, 4
          %s1033 = int_to_ptr.hbm [resolvable:$true] %s1032
          %1038 = dma.vmem_to_hbm [thread:$0]  %s1031, 1024, %s1033, %s1019, 128, 256, 8
        $region68: #{tpu_custom_call.1} parent=43 // pred_fallthru
          _
      $region44: #{tpu_custom_call.1} parent=5 // pred_fallthru
        _
      %p1039 = scmp.le.s32.totalorder 2, %s22
      // Predicated region
      $region69: #{tpu_custom_call.1} parent=5 // pred_check
        %p1040 = pneg %p1039
      $region70: #{tpu_custom_call.1} parent=5 // pred_check_branch
        %1042 = sbr.rel (%p1040) target = $region72
      $region71: #{tpu_custom_call.1} parent=5 // pred_region
        %s1043 = ssub.s32 %s22, 2
        // Predicated region
        $region73: #{tpu_custom_call.1} parent=71 // pred_check
          %p1044 = pneg %p192
        $region74: #{tpu_custom_call.1} parent=71 // pred_check_branch
          %1046 = sbr.rel (%p1044) target = $region76
        $region75: #{tpu_custom_call.1} parent=71 // pred_region
          %s1047 = sand.u32 %s177, 1
          %s1048 = scalar_lea.sflag [#allocation5], %s1047
          %s1049 = sand.u32 %s177, 1
          %s1050 = smul.addr %s1049, 64
          %s1051 = scalar_lea.vmem [#allocation12], %s1050
          %1053 = dma.done %s1048, 1024
        $region76: #{tpu_custom_call.1} parent=71 // pred_fallthru
          _
      $region72: #{tpu_custom_call.1} parent=5 // pred_fallthru
        _
    $region6: #{tpu_custom_call.1} parent=1 // loop_footer
      %s26 = sadd.s32 1, %s22
    $region7: #{tpu_custom_call.1} parent=1 // loop_footer_branch
      %21 = sbr.rel target = $region3
    $region8: #{tpu_custom_call.1} parent=1 // loop_exit
      _
    %1054 = vsyncpa [#allocation4], 1
    %s1055 = scalar_lea.sflag [#allocation4], 1
    %1056 = vsyncpa %s1055, 1
    %1057 = vsyncpa [#allocation7], 1
    %s1058 = scalar_lea.sflag [#allocation7], 1
    %1059 = vsyncpa %s1058, 1
    %1060 = vsyncpa [#allocation10], 1
    %1061 = vsyncpa [#allocation5], 1
    %s1062 = scalar_lea.sflag [#allocation5], 1
    %1063 = vsyncpa %s1062, 1

</llo_original>
